<compile_context>
chip_gen: v7x
topology: tpu7x:2x2x1
jax: 0.10.0
libtpu: 0.0.40
codegen_flags: <defaults>
</compile_context>

<pallas_src>
import jax
import jax.numpy as jnp
from jax import lax
from jax.experimental import pallas as pl
from jax.experimental.pallas import tpu as pltpu

LN_EPS = 1e-5

_COMPILER_PARAMS = pltpu.CompilerParams(
    dimension_semantics=("parallel", "parallel"),
    vmem_limit_bytes=64 * 1024 * 1024,
)


# ---------------------------------------------------------------------------
# In-kernel helpers
# ---------------------------------------------------------------------------
def _layer_norm_f32(x, gamma, beta, eps=LN_EPS):
    """Row-wise LayerNorm, computed in f32. gamma/beta are (1, C)."""
    xf = x.astype(jnp.float32)
    mu = jnp.mean(xf, axis=-1, keepdims=True)
    xc = xf - mu
    var = jnp.mean(xc * xc, axis=-1, keepdims=True)
    inv = lax.rsqrt(var + eps)
    return xc * inv * gamma.astype(jnp.float32) + beta.astype(jnp.float32)


def _gelu_tanh_f32(x):
    c = jnp.float32(0.7978845608028654)  # sqrt(2/pi)
    return 0.5 * x * (1.0 + jnp.tanh(c * (x + 0.044715 * x * x * x)))


# ---------------------------------------------------------------------------
# Fused (LayerNorm -> multi-head attention -> proj -> gamma -> residual) kernel
# ---------------------------------------------------------------------------
def _make_attn_kernel(num_heads: int, norm_kv: bool):
    def kernel(xq_ref, kv_ref, ln_w_ref, ln_b_ref,
               wq_ref, wk_ref, wv_ref, wo_ref, bo_ref, gamma_ref, o_ref):
        # xq_ref: (1, TQ, C) query source + residual      kv_ref: (1, NK, C) key/value source
        # ln_*:   (1, C)     wq/wk/wv: (H, C, D) head-major (scale folded into wq)
        # wo:     (H, D, C)  bo/gamma: (1, C)              o_ref: (1, TQ, C)
        xq = xq_ref[0]                       # (TQ, C)
        kv_src = kv_ref[0]                   # (NK, C)
        cdt = xq.dtype                       # MXU operand dtype (keep input precision)

        ln_w = ln_w_ref[...]
        ln_b = ln_b_ref[...]

        q_in = _layer_norm_f32(xq, ln_w, ln_b).astype(cdt)            # (TQ, C)
        if norm_kv:
            # self-attention: K/V come from the same LayerNorm of x
            kv_in = _layer_norm_f32(kv_src, ln_w, ln_b).astype(cdt)   # (NK, C)
        else:
            # cross-attention: y is used raw (norm2 is applied to x only)
            kv_in = kv_src

        tq = xq.shape[0]
        c_dim = xq.shape[1]

        # Per-head loop: head weights are selected on the LEADING dim of the weight refs
        # (no lane slicing of activations, no concat); the head output projection is
        # accumulated directly into a (TQ, C) f32 accumulator.
        acc = jnp.zeros((tq, c_dim), jnp.float32)
        for h in range(num_heads):
            q_h = jnp.dot(q_in, wq_ref[h], preferred_element_type=jnp.float32)   # (TQ, D)
            k_h = jnp.dot(kv_in, wk_ref[h], preferred_element_type=jnp.float32)  # (NK, D)
            v_h = jnp.dot(kv_in, wv_ref[h], preferred_element_type=jnp.float32)  # (NK, D)

            # scores: contract last dims -> no materialized k.T
            s = jnp.einsum("qd,kd->qk", q_h.astype(cdt), k_h.astype(cdt),
                           preferred_element_type=jnp.float32)                   # (TQ, NK)
            s_max = jnp.max(s, axis=-1, keepdims=True)
            p = jnp.exp(s - s_max)
            denom = jnp.sum(p, axis=-1, keepdims=True)
            p = p * pl.reciprocal(denom, approx=True)                            # EUP recip

            ctx = jnp.dot(p.astype(cdt), v_h.astype(cdt),
                          preferred_element_type=jnp.float32)                    # (TQ, D)
            acc = acc + jnp.dot(ctx.astype(cdt), wo_ref[h],
                                preferred_element_type=jnp.float32)              # (TQ, C)

        out = (acc + bo_ref[...].astype(jnp.float32)) * gamma_ref[...].astype(jnp.float32)
        o_ref[0] = (xq.astype(jnp.float32) + out).astype(o_ref.dtype)

    return kernel


def _pick_row_tile(n):
    if n <= 512:
        return n
    for t in (512, 256, 128):
        if n % t == 0:
            return t
    return n


def _vec2(v):
    return v.reshape(1, -1)


def fused_attention(x, kv_src, ln_w, ln_b, wq3, wk3, wv3, wo3, bo, gamma,
                    *, norm_kv, block_q=None):
    """x: (B, N1, C) query source + residual; kv_src: (B, NK, C) key/value source."""
    B, N1, C = x.shape
    _, NK, _ = kv_src.shape
    H, _, D = wq3.shape
    tq = block_q or _pick_row_tile(N1)
    assert N1 % tq == 0, "query tile must divide N1"

    kernel = _make_attn_kernel(H, norm_kv)
    return pl.pallas_call(
        kernel,
        out_shape=jax.ShapeDtypeStruct((B, N1, C), x.dtype),
        grid_spec=pltpu.PrefetchScalarGridSpec(
            num_scalar_prefetch=0,
            grid=(B, N1 // tq),
            in_specs=[
                pl.BlockSpec((1, tq, C), lambda b, i: (b, i, 0)),   # x query tile
                pl.BlockSpec((1, NK, C), lambda b, i: (b, 0, 0)),   # full K/V source
                pl.BlockSpec((1, C), lambda b, i: (0, 0)),          # LN weight
                pl.BlockSpec((1, C), lambda b, i: (0, 0)),          # LN bias
                pl.BlockSpec((H, C, D), lambda b, i: (0, 0, 0)),    # Wq (scaled)
                pl.BlockSpec((H, C, D), lambda b, i: (0, 0, 0)),    # Wk
                pl.BlockSpec((H, C, D), lambda b, i: (0, 0, 0)),    # Wv
                pl.BlockSpec((H, D, C), lambda b, i: (0, 0, 0)),    # Wproj (head-major rows)
                pl.BlockSpec((1, C), lambda b, i: (0, 0)),          # proj bias
                pl.BlockSpec((1, C), lambda b, i: (0, 0)),          # gamma
            ],
            out_specs=pl.BlockSpec((1, tq, C), lambda b, i: (b, i, 0)),
        ),
        compiler_params=_COMPILER_PARAMS,
    )(x, kv_src, _vec2(ln_w), _vec2(ln_b), wq3, wk3, wv3, wo3, _vec2(bo), _vec2(gamma))


# ---------------------------------------------------------------------------
# Fused (LayerNorm -> MLP -> gamma -> residual) kernel
# ---------------------------------------------------------------------------
def _mlp_kernel(x_ref, ln_w_ref, ln_b_ref, w1_ref, b1_ref, w2_ref, b2_ref, gamma_ref, o_ref):
    x = x_ref[0]                                                   # (T, C)
    cdt = x.dtype
    xn = _layer_norm_f32(x, ln_w_ref[...], ln_b_ref[...]).astype(cdt)
    h = jnp.dot(xn, w1_ref[...], preferred_element_type=jnp.float32)
    h = h + b1_ref[...].astype(jnp.float32)
    h = _gelu_tanh_f32(h).astype(cdt)
    out = jnp.dot(h, w2_ref[...], preferred_element_type=jnp.float32)
    out = (out + b2_ref[...].astype(jnp.float32)) * gamma_ref[...].astype(jnp.float32)
    o_ref[0] = (x.astype(jnp.float32) + out).astype(o_ref.dtype)


def fused_mlp(x, ln_w, ln_b, w1_t, b1, w2_t, b2, gamma, *, block_rows=None):
    B, N, C = x.shape
    Hd = w1_t.shape[1]
    t = block_rows or _pick_row_tile(N)
    assert N % t == 0
    return pl.pallas_call(
        _mlp_kernel,
        out_shape=jax.ShapeDtypeStruct((B, N, C), x.dtype),
        grid_spec=pltpu.PrefetchScalarGridSpec(
            num_scalar_prefetch=0,
            grid=(B, N // t),
            in_specs=[
                pl.BlockSpec((1, t, C), lambda b, i: (b, i, 0)),
                pl.BlockSpec((1, C), lambda b, i: (0, 0)),
                pl.BlockSpec((1, C), lambda b, i: (0, 0)),
                pl.BlockSpec((C, Hd), lambda b, i: (0, 0)),
                pl.BlockSpec((1, Hd), lambda b, i: (0, 0)),
                pl.BlockSpec((Hd, C), lambda b, i: (0, 0)),
                pl.BlockSpec((1, C), lambda b, i: (0, 0)),
                pl.BlockSpec((1, C), lambda b, i: (0, 0)),
            ],
            out_specs=pl.BlockSpec((1, t, C), lambda b, i: (b, i, 0)),
        ),
        compiler_params=_COMPILER_PARAMS,
    )(x, _vec2(ln_w), _vec2(ln_b), w1_t, _vec2(b1), w2_t, _vec2(b2), _vec2(gamma))


# ---------------------------------------------------------------------------
# Full CrossAttnBlock forward (Pallas) + parameter preparation
# ---------------------------------------------------------------------------
def prepare_params(tp, num_heads, head_dim):
    """Convert torch-layout (out_features, in_features) weights into the head-major,
    pre-transposed, scale-folded layout consumed by the kernels (one-time transform)."""
    H, D = num_heads, head_dim
    AHD = H * D
    scale = D ** (-0.5)

    def in_split(w_t):            # (C, H*D) -> (H, C, D)
        C = w_t.shape[0]
        return jnp.transpose(w_t.reshape(C, H, D), (1, 0, 2))

    def out_split(w_t):           # (H*D, C) -> (H, D, C)
        C = w_t.shape[1]
        return w_t.reshape(H, D, C)

    qkv_t = tp["attn_qkv_w"].T    # (C, 3*AHD) ordered [q | k | v], each head-major
    kv_t = tp["cross_kv_w"].T     # (C, 2*AHD) ordered [k | v]
    return dict(
        n1_w=tp["norm1_w"], n1_b=tp["norm1_b"],
        n2_w=tp["norm2_w"], n2_b=tp["norm2_b"],
        n3_w=tp["norm3_w"], n3_b=tp["norm3_b"],
        sa_wq3=in_split(qkv_t[:, :AHD]) * scale,        # 1/sqrt(D) folded into Wq
        sa_wk3=in_split(qkv_t[:, AHD:2 * AHD]),
        sa_wv3=in_split(qkv_t[:, 2 * AHD:]),
        sa_wo3=out_split(tp["attn_proj_w"].T),
        sa_bo=tp["attn_proj_b"],
        ca_wq3=in_split(tp["cross_q_w"].T) * scale,
        ca_wk3=in_split(kv_t[:, :AHD]),
        ca_wv3=in_split(kv_t[:, AHD:]),
        ca_wo3=out_split(tp["cross_proj_w"].T),
        ca_bo=tp["cross_proj_b"],
        w1_t=tp["mlp_fc1_w"].T, b1=tp["mlp_fc1_b"],
        w2_t=tp["mlp_fc2_w"].T, b2=tp["mlp_fc2_b"],
        gamma1=tp["gamma1"], gamma2=tp["gamma2"], gamma3=tp["gamma3"],
    )


def cross_attn_block_pallas(x, y, p):
    # x = x + gamma1 * attn(norm1(x))
    x = fused_attention(x, x, p["n1_w"], p["n1_b"],
                        p["sa_wq3"], p["sa_wk3"], p["sa_wv3"], p["sa_wo3"], p["sa_bo"],
                        p["gamma1"], norm_kv=True)
    # x = x + gamma2 * cross_attn(norm2(x), y)
    x = fused_attention(x, y, p["n2_w"], p["n2_b"],
                        p["ca_wq3"], p["ca_wk3"], p["ca_wv3"], p["ca_wo3"], p["ca_bo"],
                        p["gamma2"], norm_kv=False)
    # x = x + gamma3 * mlp(norm3(x))
    x = fused_mlp(x, p["n3_w"], p["n3_b"], p["w1_t"], p["b1"], p["w2_t"], p["b2"], p["gamma3"])
    return x


# ---------------------------------------------------------------------------
# Pure-JAX reference mirroring the PyTorch forward
# ---------------------------------------------------------------------------
def _ln_ref(x, g, b, eps=LN_EPS):
    mu = jnp.mean(x, axis=-1, keepdims=True)
    var = jnp.mean((x - mu) ** 2, axis=-1, keepdims=True)
    return (x - mu) * lax.rsqrt(var + eps) * g + b


def _mha_ref(q_in, kv_in, wq_t, wk_t, wv_t, wproj_t, bproj, num_heads, scale):
    B, N1, _ = q_in.shape
    _, N2, _ = kv_in.shape
    AHD = wq_t.shape[1]
    D = AHD // num_heads
    q = (q_in @ wq_t).reshape(B, N1, num_heads, D).transpose(0, 2, 1, 3) * scale
    k = (kv_in @ wk_t).reshape(B, N2, num_heads, D).transpose(0, 2, 1, 3)
    v = (kv_in @ wv_t).reshape(B, N2, num_heads, D).transpose(0, 2, 1, 3)
    attn = jax.nn.softmax(jnp.einsum("bhqd,bhkd->bhqk", q, k), axis=-1)
    out = jnp.einsum("bhqk,bhkd->bhqd", attn, v)
    out = out.transpose(0, 2, 1, 3).reshape(B, N1, AHD)
    return out @ wproj_t + bproj


def cross_attn_block_ref(x, y, tp, num_heads, head_dim):
    AHD = num_heads * head_dim
    scale = head_dim ** (-0.5)
    qkv_t = tp["attn_qkv_w"].T
    kv_t = tp["cross_kv_w"].T

    xn = _ln_ref(x, tp["norm1_w"], tp["norm1_b"])
    sa = _mha_ref(xn, xn, qkv_t[:, :AHD], qkv_t[:, AHD:2 * AHD], qkv_t[:, 2 * AHD:],
                  tp["attn_proj_w"].T, tp["attn_proj_b"], num_heads, scale)
    x = x + tp["gamma1"] * sa

    xn = _ln_ref(x, tp["norm2_w"], tp["norm2_b"])
    ca = _mha_ref(xn, y, tp["cross_q_w"].T, kv_t[:, :AHD], kv_t[:, AHD:],
                  tp["cross_proj_w"].T, tp["cross_proj_b"], num_heads, scale)
    x = x + tp["gamma2"] * ca

    xn = _ln_ref(x, tp["norm3_w"], tp["norm3_b"])
    h = jax.nn.gelu(xn @ tp["mlp_fc1_w"].T + tp["mlp_fc1_b"], approximate=True)
    m = h @ tp["mlp_fc2_w"].T + tp["mlp_fc2_b"]
    x = x + tp["gamma3"] * m
    return x


# ---------------------------------------------------------------------------
if __name__ == "__main__":
    # Small shapes consistent with the module's forward: x (B, N1, C), y (B, N2, C)
    B, N1, N2, C = 2, 8, 16, 32
    num_heads = 4
    head_dim = C // num_heads
    AHD = num_heads * head_dim
    mlp_hidden = 4 * C
    init_values = 0.1

    keys = iter(jax.random.split(jax.random.PRNGKey(0), 24))

    def rand(shape, scale=0.1):
        return jax.random.normal(next(keys), shape, dtype=jnp.float32) * scale

    x = jax.random.normal(next(keys), (B, N1, C), dtype=jnp.float32)
    y = jax.random.normal(next(keys), (B, N2, C), dtype=jnp.float32)

    # torch-layout parameters (weights are (out_features, in_features))
    tp = dict(
        norm1_w=1.0 + rand((C,)), norm1_b=rand((C,)),
        norm2_w=1.0 + rand((C,)), norm2_b=rand((C,)),
        norm3_w=1.0 + rand((C,)), norm3_b=rand((C,)),
        attn_qkv_w=rand((3 * AHD, C)),
        attn_proj_w=rand((C, AHD)), attn_proj_b=rand((C,)),
        cross_q_w=rand((AHD, C)), cross_kv_w=rand((2 * AHD, C)),
        cross_proj_w=rand((C, AHD)), cross_proj_b=rand((C,)),
        mlp_fc1_w=rand((mlp_hidden, C)), mlp_fc1_b=rand((mlp_hidden,)),
        mlp_fc2_w=rand((C, mlp_hidden)), mlp_fc2_b=rand((C,)),
        gamma1=jnp.full((C,), init_values, jnp.float32),
        gamma2=jnp.full((C,), init_values, jnp.float32),
        gamma3=jnp.full((C,), init_values, jnp.float32),
    )

    params = prepare_params(tp, num_heads, head_dim)
    out = cross_attn_block_pallas(x, y, params)
    out = jax.block_until_ready(out)

    ref = cross_attn_block_ref(x, y, tp, num_heads, head_dim)
    assert out.shape == (B, N1, C)
    max_err = float(jnp.max(jnp.abs(out - ref)))
    assert jnp.allclose(out, ref, atol=2e-3, rtol=2e-3), f"max abs err {max_err}"

    print("KERNEL_OK")
</pallas_src>

<mosaic_0001>
module attributes {stable_mosaic.version = 11 : i64} {
  func.func @kernel(%arg0: i32, %arg1: i32, %arg2: memref<1x8x32xf32, #tpu.memory_space<vmem>>, %arg3: memref<1x8x32xf32, #tpu.memory_space<vmem>>, %arg4: memref<1x32xf32, #tpu.memory_space<vmem>>, %arg5: memref<1x32xf32, #tpu.memory_space<vmem>>, %arg6: memref<4x32x8xf32, #tpu.memory_space<vmem>>, %arg7: memref<4x32x8xf32, #tpu.memory_space<vmem>>, %arg8: memref<4x32x8xf32, #tpu.memory_space<vmem>>, %arg9: memref<4x8x32xf32, #tpu.memory_space<vmem>>, %arg10: memref<1x32xf32, #tpu.memory_space<vmem>>, %arg11: memref<1x32xf32, #tpu.memory_space<vmem>>, %arg12: memref<1x8x32xf32, #tpu.memory_space<vmem>>) attributes {dimension_semantics = [#tpu.dimension_semantics<parallel>, #tpu.dimension_semantics<parallel>], iteration_bounds = array<i64: 2, 1>, scalar_prefetch = 0 : i64, scratch_operands = 0 : i64, tpu.core_type = #tpu.core_type<tc>, window_params = [{transform_indices = @transform_0, window_bounds = array<i64: 1, 8, 32>}, {transform_indices = @transform_1, window_bounds = array<i64: 1, 8, 32>}, {pipeline_mode = #tpu.pipeline_mode<synchronous>, transform_indices = @transform_2, window_bounds = array<i64: 1, 32>}, {pipeline_mode = #tpu.pipeline_mode<synchronous>, transform_indices = @transform_3, window_bounds = array<i64: 1, 32>}, {pipeline_mode = #tpu.pipeline_mode<synchronous>, transform_indices = @transform_4, window_bounds = array<i64: 4, 32, 8>}, {pipeline_mode = #tpu.pipeline_mode<synchronous>, transform_indices = @transform_5, window_bounds = array<i64: 4, 32, 8>}, {pipeline_mode = #tpu.pipeline_mode<synchronous>, transform_indices = @transform_6, window_bounds = array<i64: 4, 32, 8>}, {pipeline_mode = #tpu.pipeline_mode<synchronous>, transform_indices = @transform_7, window_bounds = array<i64: 4, 8, 32>}, {pipeline_mode = #tpu.pipeline_mode<synchronous>, transform_indices = @transform_8, window_bounds = array<i64: 1, 32>}, {pipeline_mode = #tpu.pipeline_mode<synchronous>, transform_indices = @transform_9, window_bounds = array<i64: 1, 32>}, {transform_indices = @transform_10, window_bounds = array<i64: 1, 8, 32>}]} {
    %c0 = arith.constant 0 : index
    %c0_0 = arith.constant 0 : index
    %c0_1 = arith.constant 0 : index
    %0 = vector.load %arg2[%c0, %c0_0, %c0_1] : memref<1x8x32xf32, #tpu.memory_space<vmem>>, vector<1x8x32xf32>
    %1 = vector.shape_cast %0 : vector<1x8x32xf32> to vector<8x32xf32>
    %c0_2 = arith.constant 0 : index
    %c0_3 = arith.constant 0 : index
    %c0_4 = arith.constant 0 : index
    %2 = vector.load %arg3[%c0_2, %c0_3, %c0_4] : memref<1x8x32xf32, #tpu.memory_space<vmem>>, vector<1x8x32xf32>
    %3 = vector.shape_cast %2 : vector<1x8x32xf32> to vector<8x32xf32>
    %c0_5 = arith.constant 0 : index
    %c0_6 = arith.constant 0 : index
    %4 = vector.load %arg4[%c0_5, %c0_6] : memref<1x32xf32, #tpu.memory_space<vmem>>, vector<1x32xf32>
    %c0_7 = arith.constant 0 : index
    %c0_8 = arith.constant 0 : index
    %5 = vector.load %arg5[%c0_7, %c0_8] : memref<1x32xf32, #tpu.memory_space<vmem>>, vector<1x32xf32>
    %cst = arith.constant dense<0.000000e+00> : vector<8xf32>
    %6 = vector.multi_reduction <add>, %1, %cst [1] : vector<8x32xf32> to vector<8xf32>
    %7 = vector.shape_cast %6 : vector<8xf32> to vector<8x1xf32>
    %cst_9 = arith.constant 3.200000e+01 : f32
    %8 = vector.broadcast %cst_9 : f32 to vector<8x1xf32>
    %9 = arith.divf %7, %8 : vector<8x1xf32>
    %10 = vector.broadcast %9 : vector<8x1xf32> to vector<8x32xf32>
    %11 = arith.subf %1, %10 : vector<8x32xf32>
    %12 = arith.mulf %11, %11 : vector<8x32xf32>
    %cst_10 = arith.constant dense<0.000000e+00> : vector<8xf32>
    %13 = vector.multi_reduction <add>, %12, %cst_10 [1] : vector<8x32xf32> to vector<8xf32>
    %14 = vector.shape_cast %13 : vector<8xf32> to vector<8x1xf32>
    %cst_11 = arith.constant 3.200000e+01 : f32
    %15 = vector.broadcast %cst_11 : f32 to vector<8x1xf32>
    %16 = arith.divf %14, %15 : vector<8x1xf32>
    %cst_12 = arith.constant 9.99999974E-6 : f32
    %17 = vector.broadcast %cst_12 : f32 to vector<8x1xf32>
    %18 = arith.addf %16, %17 : vector<8x1xf32>
    %19 = math.rsqrt %18 : vector<8x1xf32>
    %20 = vector.broadcast %19 : vector<8x1xf32> to vector<8x32xf32>
    %21 = arith.mulf %11, %20 : vector<8x32xf32>
    %22 = vector.broadcast %4 : vector<1x32xf32> to vector<8x32xf32>
    %23 = arith.mulf %21, %22 : vector<8x32xf32>
    %24 = vector.broadcast %5 : vector<1x32xf32> to vector<8x32xf32>
    %25 = arith.addf %23, %24 : vector<8x32xf32>
    %cst_13 = arith.constant dense<0.000000e+00> : vector<8xf32>
    %26 = vector.multi_reduction <add>, %3, %cst_13 [1] : vector<8x32xf32> to vector<8xf32>
    %27 = vector.shape_cast %26 : vector<8xf32> to vector<8x1xf32>
    %cst_14 = arith.constant 3.200000e+01 : f32
    %28 = vector.broadcast %cst_14 : f32 to vector<8x1xf32>
    %29 = arith.divf %27, %28 : vector<8x1xf32>
    %30 = vector.broadcast %29 : vector<8x1xf32> to vector<8x32xf32>
    %31 = arith.subf %3, %30 : vector<8x32xf32>
    %32 = arith.mulf %31, %31 : vector<8x32xf32>
    %cst_15 = arith.constant dense<0.000000e+00> : vector<8xf32>
    %33 = vector.multi_reduction <add>, %32, %cst_15 [1] : vector<8x32xf32> to vector<8xf32>
    %34 = vector.shape_cast %33 : vector<8xf32> to vector<8x1xf32>
    %cst_16 = arith.constant 3.200000e+01 : f32
    %35 = vector.broadcast %cst_16 : f32 to vector<8x1xf32>
    %36 = arith.divf %34, %35 : vector<8x1xf32>
    %cst_17 = arith.constant 9.99999974E-6 : f32
    %37 = vector.broadcast %cst_17 : f32 to vector<8x1xf32>
    %38 = arith.addf %36, %37 : vector<8x1xf32>
    %39 = math.rsqrt %38 : vector<8x1xf32>
    %40 = vector.broadcast %39 : vector<8x1xf32> to vector<8x32xf32>
    %41 = arith.mulf %31, %40 : vector<8x32xf32>
    %42 = vector.broadcast %4 : vector<1x32xf32> to vector<8x32xf32>
    %43 = arith.mulf %41, %42 : vector<8x32xf32>
    %44 = vector.broadcast %5 : vector<1x32xf32> to vector<8x32xf32>
    %45 = arith.addf %43, %44 : vector<8x32xf32>
    %cst_18 = arith.constant 0.000000e+00 : f32
    %46 = vector.broadcast %cst_18 : f32 to vector<8x32xf32>
    %c0_19 = arith.constant 0 : index
    %c0_20 = arith.constant 0 : index
    %c0_21 = arith.constant 0 : index
    %47 = vector.load %arg6[%c0_19, %c0_20, %c0_21] : memref<4x32x8xf32, #tpu.memory_space<vmem>>, vector<1x32x8xf32>
    %48 = vector.shape_cast %47 : vector<1x32x8xf32> to vector<32x8xf32>
    %cst_22 = arith.constant dense<0.000000e+00> : vector<8x8xf32>
    %49 = tpu.matmul %25, %48, %cst_22 {dimension_numbers = #tpu.dot_dimension_numbers<[1], [0], [0], [1], [0, 0, 1, 1], [], []>} : vector<8x32xf32>, vector<32x8xf32>, vector<8x8xf32> -> vector<8x8xf32>
    %c0_23 = arith.constant 0 : index
    %c0_24 = arith.constant 0 : index
    %c0_25 = arith.constant 0 : index
    %50 = vector.load %arg7[%c0_23, %c0_24, %c0_25] : memref<4x32x8xf32, #tpu.memory_space<vmem>>, vector<1x32x8xf32>
    %51 = vector.shape_cast %50 : vector<1x32x8xf32> to vector<32x8xf32>
    %cst_26 = arith.constant dense<0.000000e+00> : vector<8x8xf32>
    %52 = tpu.matmul %45, %51, %cst_26 {dimension_numbers = #tpu.dot_dimension_numbers<[1], [0], [0], [1], [0, 0, 1, 1], [], []>} : vector<8x32xf32>, vector<32x8xf32>, vector<8x8xf32> -> vector<8x8xf32>
    %c0_27 = arith.constant 0 : index
    %c0_28 = arith.constant 0 : index
    %c0_29 = arith.constant 0 : index
    %53 = vector.load %arg8[%c0_27, %c0_28, %c0_29] : memref<4x32x8xf32, #tpu.memory_space<vmem>>, vector<1x32x8xf32>
    %54 = vector.shape_cast %53 : vector<1x32x8xf32> to vector<32x8xf32>
    %cst_30 = arith.constant dense<0.000000e+00> : vector<8x8xf32>
    %55 = tpu.matmul %45, %54, %cst_30 {dimension_numbers = #tpu.dot_dimension_numbers<[1], [0], [0], [1], [0, 0, 1, 1], [], []>} : vector<8x32xf32>, vector<32x8xf32>, vector<8x8xf32> -> vector<8x8xf32>
    "tpu.trace_start"() <{level = 10 : i32, message = "qd,kd->qk"}> : () -> ()
    %cst_31 = arith.constant dense<0.000000e+00> : vector<8x8xf32>
    %56 = tpu.matmul %49, %52, %cst_31 {dimension_numbers = #tpu.dot_dimension_numbers<[1], [1], [0], [0], [0, 0, 1, 0], [], []>} : vector<8x8xf32>, vector<8x8xf32>, vector<8x8xf32> -> vector<8x8xf32>
    "tpu.trace_stop"() : () -> ()
    %cst_32 = arith.constant dense<0xFF800000> : vector<8xf32>
    %57 = vector.multi_reduction <maximumf>, %56, %cst_32 [1] : vector<8x8xf32> to vector<8xf32>
    %58 = vector.shape_cast %57 : vector<8xf32> to vector<8x1xf32>
    %59 = vector.broadcast %58 : vector<8x1xf32> to vector<8x8xf32>
    %60 = arith.subf %56, %59 : vector<8x8xf32>
    %61 = math.exp %60 : vector<8x8xf32>
    %cst_33 = arith.constant dense<0.000000e+00> : vector<8xf32>
    %62 = vector.multi_reduction <add>, %61, %cst_33 [1] : vector<8x8xf32> to vector<8xf32>
    %63 = vector.shape_cast %62 : vector<8xf32> to vector<8x1xf32>
    %64 = tpu.reciprocal %63 {approx = true} : vector<8x1xf32> -> vector<8x1xf32>
    %65 = vector.broadcast %64 : vector<8x1xf32> to vector<8x8xf32>
    %66 = arith.mulf %61, %65 : vector<8x8xf32>
    %cst_34 = arith.constant dense<0.000000e+00> : vector<8x8xf32>
    %67 = tpu.matmul %66, %55, %cst_34 {dimension_numbers = #tpu.dot_dimension_numbers<[1], [0], [0], [1], [0, 0, 1, 1], [], []>} : vector<8x8xf32>, vector<8x8xf32>, vector<8x8xf32> -> vector<8x8xf32>
    %c0_35 = arith.constant 0 : index
    %c0_36 = arith.constant 0 : index
    %c0_37 = arith.constant 0 : index
    %68 = vector.load %arg9[%c0_35, %c0_36, %c0_37] : memref<4x8x32xf32, #tpu.memory_space<vmem>>, vector<1x8x32xf32>
    %69 = vector.shape_cast %68 : vector<1x8x32xf32> to vector<8x32xf32>
    %cst_38 = arith.constant dense<0.000000e+00> : vector<8x32xf32>
    %70 = tpu.matmul %67, %69, %cst_38 {dimension_numbers = #tpu.dot_dimension_numbers<[1], [0], [0], [1], [0, 0, 1, 1], [], []>} : vector<8x8xf32>, vector<8x32xf32>, vector<8x32xf32> -> vector<8x32xf32>
    %71 = arith.addf %46, %70 : vector<8x32xf32>
    %c1 = arith.constant 1 : index
    %c0_39 = arith.constant 0 : index
    %c0_40 = arith.constant 0 : index
    %72 = vector.load %arg6[%c1, %c0_39, %c0_40] : memref<4x32x8xf32, #tpu.memory_space<vmem>>, vector<1x32x8xf32>
    %73 = vector.shape_cast %72 : vector<1x32x8xf32> to vector<32x8xf32>
    %cst_41 = arith.constant dense<0.000000e+00> : vector<8x8xf32>
    %74 = tpu.matmul %25, %73, %cst_41 {dimension_numbers = #tpu.dot_dimension_numbers<[1], [0], [0], [1], [0, 0, 1, 1], [], []>} : vector<8x32xf32>, vector<32x8xf32>, vector<8x8xf32> -> vector<8x8xf32>
    %c1_42 = arith.constant 1 : index
    %c0_43 = arith.constant 0 : index
    %c0_44 = arith.constant 0 : index
    %75 = vector.load %arg7[%c1_42, %c0_43, %c0_44] : memref<4x32x8xf32, #tpu.memory_space<vmem>>, vector<1x32x8xf32>
    %76 = vector.shape_cast %75 : vector<1x32x8xf32> to vector<32x8xf32>
    %cst_45 = arith.constant dense<0.000000e+00> : vector<8x8xf32>
    %77 = tpu.matmul %45, %76, %cst_45 {dimension_numbers = #tpu.dot_dimension_numbers<[1], [0], [0], [1], [0, 0, 1, 1], [], []>} : vector<8x32xf32>, vector<32x8xf32>, vector<8x8xf32> -> vector<8x8xf32>
    %c1_46 = arith.constant 1 : index
    %c0_47 = arith.constant 0 : index
    %c0_48 = arith.constant 0 : index
    %78 = vector.load %arg8[%c1_46, %c0_47, %c0_48] : memref<4x32x8xf32, #tpu.memory_space<vmem>>, vector<1x32x8xf32>
    %79 = vector.shape_cast %78 : vector<1x32x8xf32> to vector<32x8xf32>
    %cst_49 = arith.constant dense<0.000000e+00> : vector<8x8xf32>
    %80 = tpu.matmul %45, %79, %cst_49 {dimension_numbers = #tpu.dot_dimension_numbers<[1], [0], [0], [1], [0, 0, 1, 1], [], []>} : vector<8x32xf32>, vector<32x8xf32>, vector<8x8xf32> -> vector<8x8xf32>
    "tpu.trace_start"() <{level = 10 : i32, message = "qd,kd->qk"}> : () -> ()
    %cst_50 = arith.constant dense<0.000000e+00> : vector<8x8xf32>
    %81 = tpu.matmul %74, %77, %cst_50 {dimension_numbers = #tpu.dot_dimension_numbers<[1], [1], [0], [0], [0, 0, 1, 0], [], []>} : vector<8x8xf32>, vector<8x8xf32>, vector<8x8xf32> -> vector<8x8xf32>
    "tpu.trace_stop"() : () -> ()
    %cst_51 = arith.constant dense<0xFF800000> : vector<8xf32>
    %82 = vector.multi_reduction <maximumf>, %81, %cst_51 [1] : vector<8x8xf32> to vector<8xf32>
    %83 = vector.shape_cast %82 : vector<8xf32> to vector<8x1xf32>
    %84 = vector.broadcast %83 : vector<8x1xf32> to vector<8x8xf32>
    %85 = arith.subf %81, %84 : vector<8x8xf32>
    %86 = math.exp %85 : vector<8x8xf32>
    %cst_52 = arith.constant dense<0.000000e+00> : vector<8xf32>
    %87 = vector.multi_reduction <add>, %86, %cst_52 [1] : vector<8x8xf32> to vector<8xf32>
    %88 = vector.shape_cast %87 : vector<8xf32> to vector<8x1xf32>
    %89 = tpu.reciprocal %88 {approx = true} : vector<8x1xf32> -> vector<8x1xf32>
    %90 = vector.broadcast %89 : vector<8x1xf32> to vector<8x8xf32>
    %91 = arith.mulf %86, %90 : vector<8x8xf32>
    %cst_53 = arith.constant dense<0.000000e+00> : vector<8x8xf32>
    %92 = tpu.matmul %91, %80, %cst_53 {dimension_numbers = #tpu.dot_dimension_numbers<[1], [0], [0], [1], [0, 0, 1, 1], [], []>} : vector<8x8xf32>, vector<8x8xf32>, vector<8x8xf32> -> vector<8x8xf32>
    %c1_54 = arith.constant 1 : index
    %c0_55 = arith.constant 0 : index
    %c0_56 = arith.constant 0 : index
    %93 = vector.load %arg9[%c1_54, %c0_55, %c0_56] : memref<4x8x32xf32, #tpu.memory_space<vmem>>, vector<1x8x32xf32>
    %94 = vector.shape_cast %93 : vector<1x8x32xf32> to vector<8x32xf32>
    %cst_57 = arith.constant dense<0.000000e+00> : vector<8x32xf32>
    %95 = tpu.matmul %92, %94, %cst_57 {dimension_numbers = #tpu.dot_dimension_numbers<[1], [0], [0], [1], [0, 0, 1, 1], [], []>} : vector<8x8xf32>, vector<8x32xf32>, vector<8x32xf32> -> vector<8x32xf32>
    %96 = arith.addf %71, %95 : vector<8x32xf32>
    %c2 = arith.constant 2 : index
    %c0_58 = arith.constant 0 : index
    %c0_59 = arith.constant 0 : index
    %97 = vector.load %arg6[%c2, %c0_58, %c0_59] : memref<4x32x8xf32, #tpu.memory_space<vmem>>, vector<1x32x8xf32>
    %98 = vector.shape_cast %97 : vector<1x32x8xf32> to vector<32x8xf32>
    %cst_60 = arith.constant dense<0.000000e+00> : vector<8x8xf32>
    %99 = tpu.matmul %25, %98, %cst_60 {dimension_numbers = #tpu.dot_dimension_numbers<[1], [0], [0], [1], [0, 0, 1, 1], [], []>} : vector<8x32xf32>, vector<32x8xf32>, vector<8x8xf32> -> vector<8x8xf32>
    %c2_61 = arith.constant 2 : index
    %c0_62 = arith.constant 0 : index
    %c0_63 = arith.constant 0 : index
    %100 = vector.load %arg7[%c2_61, %c0_62, %c0_63] : memref<4x32x8xf32, #tpu.memory_space<vmem>>, vector<1x32x8xf32>
    %101 = vector.shape_cast %100 : vector<1x32x8xf32> to vector<32x8xf32>
    %cst_64 = arith.constant dense<0.000000e+00> : vector<8x8xf32>
    %102 = tpu.matmul %45, %101, %cst_64 {dimension_numbers = #tpu.dot_dimension_numbers<[1], [0], [0], [1], [0, 0, 1, 1], [], []>} : vector<8x32xf32>, vector<32x8xf32>, vector<8x8xf32> -> vector<8x8xf32>
    %c2_65 = arith.constant 2 : index
    %c0_66 = arith.constant 0 : index
    %c0_67 = arith.constant 0 : index
    %103 = vector.load %arg8[%c2_65, %c0_66, %c0_67] : memref<4x32x8xf32, #tpu.memory_space<vmem>>, vector<1x32x8xf32>
    %104 = vector.shape_cast %103 : vector<1x32x8xf32> to vector<32x8xf32>
    %cst_68 = arith.constant dense<0.000000e+00> : vector<8x8xf32>
    %105 = tpu.matmul %45, %104, %cst_68 {dimension_numbers = #tpu.dot_dimension_numbers<[1], [0], [0], [1], [0, 0, 1, 1], [], []>} : vector<8x32xf32>, vector<32x8xf32>, vector<8x8xf32> -> vector<8x8xf32>
    "tpu.trace_start"() <{level = 10 : i32, message = "qd,kd->qk"}> : () -> ()
    %cst_69 = arith.constant dense<0.000000e+00> : vector<8x8xf32>
    %106 = tpu.matmul %99, %102, %cst_69 {dimension_numbers = #tpu.dot_dimension_numbers<[1], [1], [0], [0], [0, 0, 1, 0], [], []>} : vector<8x8xf32>, vector<8x8xf32>, vector<8x8xf32> -> vector<8x8xf32>
    "tpu.trace_stop"() : () -> ()
    %cst_70 = arith.constant dense<0xFF800000> : vector<8xf32>
    %107 = vector.multi_reduction <maximumf>, %106, %cst_70 [1] : vector<8x8xf32> to vector<8xf32>
    %108 = vector.shape_cast %107 : vector<8xf32> to vector<8x1xf32>
    %109 = vector.broadcast %108 : vector<8x1xf32> to vector<8x8xf32>
    %110 = arith.subf %106, %109 : vector<8x8xf32>
    %111 = math.exp %110 : vector<8x8xf32>
    %cst_71 = arith.constant dense<0.000000e+00> : vector<8xf32>
    %112 = vector.multi_reduction <add>, %111, %cst_71 [1] : vector<8x8xf32> to vector<8xf32>
    %113 = vector.shape_cast %112 : vector<8xf32> to vector<8x1xf32>
    %114 = tpu.reciprocal %113 {approx = true} : vector<8x1xf32> -> vector<8x1xf32>
    %115 = vector.broadcast %114 : vector<8x1xf32> to vector<8x8xf32>
    %116 = arith.mulf %111, %115 : vector<8x8xf32>
    %cst_72 = arith.constant dense<0.000000e+00> : vector<8x8xf32>
    %117 = tpu.matmul %116, %105, %cst_72 {dimension_numbers = #tpu.dot_dimension_numbers<[1], [0], [0], [1], [0, 0, 1, 1], [], []>} : vector<8x8xf32>, vector<8x8xf32>, vector<8x8xf32> -> vector<8x8xf32>
    %c2_73 = arith.constant 2 : index
    %c0_74 = arith.constant 0 : index
    %c0_75 = arith.constant 0 : index
    %118 = vector.load %arg9[%c2_73, %c0_74, %c0_75] : memref<4x8x32xf32, #tpu.memory_space<vmem>>, vector<1x8x32xf32>
    %119 = vector.shape_cast %118 : vector<1x8x32xf32> to vector<8x32xf32>
    %cst_76 = arith.constant dense<0.000000e+00> : vector<8x32xf32>
    %120 = tpu.matmul %117, %119, %cst_76 {dimension_numbers = #tpu.dot_dimension_numbers<[1], [0], [0], [1], [0, 0, 1, 1], [], []>} : vector<8x8xf32>, vector<8x32xf32>, vector<8x32xf32> -> vector<8x32xf32>
    %121 = arith.addf %96, %120 : vector<8x32xf32>
    %c3 = arith.constant 3 : index
    %c0_77 = arith.constant 0 : index
    %c0_78 = arith.constant 0 : index
    %122 = vector.load %arg6[%c3, %c0_77, %c0_78] : memref<4x32x8xf32, #tpu.memory_space<vmem>>, vector<1x32x8xf32>
    %123 = vector.shape_cast %122 : vector<1x32x8xf32> to vector<32x8xf32>
    %cst_79 = arith.constant dense<0.000000e+00> : vector<8x8xf32>
    %124 = tpu.matmul %25, %123, %cst_79 {dimension_numbers = #tpu.dot_dimension_numbers<[1], [0], [0], [1], [0, 0, 1, 1], [], []>} : vector<8x32xf32>, vector<32x8xf32>, vector<8x8xf32> -> vector<8x8xf32>
    %c3_80 = arith.constant 3 : index
    %c0_81 = arith.constant 0 : index
    %c0_82 = arith.constant 0 : index
    %125 = vector.load %arg7[%c3_80, %c0_81, %c0_82] : memref<4x32x8xf32, #tpu.memory_space<vmem>>, vector<1x32x8xf32>
    %126 = vector.shape_cast %125 : vector<1x32x8xf32> to vector<32x8xf32>
    %cst_83 = arith.constant dense<0.000000e+00> : vector<8x8xf32>
    %127 = tpu.matmul %45, %126, %cst_83 {dimension_numbers = #tpu.dot_dimension_numbers<[1], [0], [0], [1], [0, 0, 1, 1], [], []>} : vector<8x32xf32>, vector<32x8xf32>, vector<8x8xf32> -> vector<8x8xf32>
    %c3_84 = arith.constant 3 : index
    %c0_85 = arith.constant 0 : index
    %c0_86 = arith.constant 0 : index
    %128 = vector.load %arg8[%c3_84, %c0_85, %c0_86] : memref<4x32x8xf32, #tpu.memory_space<vmem>>, vector<1x32x8xf32>
    %129 = vector.shape_cast %128 : vector<1x32x8xf32> to vector<32x8xf32>
    %cst_87 = arith.constant dense<0.000000e+00> : vector<8x8xf32>
    %130 = tpu.matmul %45, %129, %cst_87 {dimension_numbers = #tpu.dot_dimension_numbers<[1], [0], [0], [1], [0, 0, 1, 1], [], []>} : vector<8x32xf32>, vector<32x8xf32>, vector<8x8xf32> -> vector<8x8xf32>
    "tpu.trace_start"() <{level = 10 : i32, message = "qd,kd->qk"}> : () -> ()
    %cst_88 = arith.constant dense<0.000000e+00> : vector<8x8xf32>
    %131 = tpu.matmul %124, %127, %cst_88 {dimension_numbers = #tpu.dot_dimension_numbers<[1], [1], [0], [0], [0, 0, 1, 0], [], []>} : vector<8x8xf32>, vector<8x8xf32>, vector<8x8xf32> -> vector<8x8xf32>
    "tpu.trace_stop"() : () -> ()
    %cst_89 = arith.constant dense<0xFF800000> : vector<8xf32>
    %132 = vector.multi_reduction <maximumf>, %131, %cst_89 [1] : vector<8x8xf32> to vector<8xf32>
    %133 = vector.shape_cast %132 : vector<8xf32> to vector<8x1xf32>
    %134 = vector.broadcast %133 : vector<8x1xf32> to vector<8x8xf32>
    %135 = arith.subf %131, %134 : vector<8x8xf32>
    %136 = math.exp %135 : vector<8x8xf32>
    %cst_90 = arith.constant dense<0.000000e+00> : vector<8xf32>
    %137 = vector.multi_reduction <add>, %136, %cst_90 [1] : vector<8x8xf32> to vector<8xf32>
    %138 = vector.shape_cast %137 : vector<8xf32> to vector<8x1xf32>
    %139 = tpu.reciprocal %138 {approx = true} : vector<8x1xf32> -> vector<8x1xf32>
    %140 = vector.broadcast %139 : vector<8x1xf32> to vector<8x8xf32>
    %141 = arith.mulf %136, %140 : vector<8x8xf32>
    %cst_91 = arith.constant dense<0.000000e+00> : vector<8x8xf32>
    %142 = tpu.matmul %141, %130, %cst_91 {dimension_numbers = #tpu.dot_dimension_numbers<[1], [0], [0], [1], [0, 0, 1, 1], [], []>} : vector<8x8xf32>, vector<8x8xf32>, vector<8x8xf32> -> vector<8x8xf32>
    %c3_92 = arith.constant 3 : index
    %c0_93 = arith.constant 0 : index
    %c0_94 = arith.constant 0 : index
    %143 = vector.load %arg9[%c3_92, %c0_93, %c0_94] : memref<4x8x32xf32, #tpu.memory_space<vmem>>, vector<1x8x32xf32>
    %144 = vector.shape_cast %143 : vector<1x8x32xf32> to vector<8x32xf32>
    %cst_95 = arith.constant dense<0.000000e+00> : vector<8x32xf32>
    %145 = tpu.matmul %142, %144, %cst_95 {dimension_numbers = #tpu.dot_dimension_numbers<[1], [0], [0], [1], [0, 0, 1, 1], [], []>} : vector<8x8xf32>, vector<8x32xf32>, vector<8x32xf32> -> vector<8x32xf32>
    %146 = arith.addf %121, %145 : vector<8x32xf32>
    %c0_96 = arith.constant 0 : index
    %c0_97 = arith.constant 0 : index
    %147 = vector.load %arg10[%c0_96, %c0_97] : memref<1x32xf32, #tpu.memory_space<vmem>>, vector<1x32xf32>
    %148 = vector.broadcast %147 : vector<1x32xf32> to vector<8x32xf32>
    %149 = arith.addf %146, %148 : vector<8x32xf32>
    %c0_98 = arith.constant 0 : index
    %c0_99 = arith.constant 0 : index
    %150 = vector.load %arg11[%c0_98, %c0_99] : memref<1x32xf32, #tpu.memory_space<vmem>>, vector<1x32xf32>
    %151 = vector.broadcast %150 : vector<1x32xf32> to vector<8x32xf32>
    %152 = arith.mulf %149, %151 : vector<8x32xf32>
    %153 = arith.addf %1, %152 : vector<8x32xf32>
    %c0_100 = arith.constant 0 : index
    %c0_101 = arith.constant 0 : index
    %c0_102 = arith.constant 0 : index
    %154 = vector.load %arg12[%c0_100, %c0_101, %c0_102] : memref<1x8x32xf32, #tpu.memory_space<vmem>>, vector<1x8x32xf32>
    %155 = vector.shape_cast %154 : vector<1x8x32xf32> to vector<8x32xf32>
    %156 = vector.shape_cast %153 : vector<8x32xf32> to vector<1x8x32xf32>
    tpu.vector_store %arg12[%c0_100, %c0_101, %c0_102], %156 {strides = array<i32>} : memref<1x8x32xf32, #tpu.memory_space<vmem>>, vector<1x8x32xf32>,
    return
  }
  func.func @transform_0(%arg0: i32, %arg1: i32) -> (i32, i32, i32) {
    %c0_i32 = arith.constant 0 : i32
    %c0_i32_0 = arith.constant 0 : i32
    return %arg0, %arg1, %c0_i32 : i32, i32, i32
  }
  func.func @transform_1(%arg0: i32, %arg1: i32) -> (i32, i32, i32) {
    %c0_i32 = arith.constant 0 : i32
    %c0_i32_0 = arith.constant 0 : i32
    %c0_i32_1 = arith.constant 0 : i32
    return %arg0, %c0_i32, %c0_i32_0 : i32, i32, i32
  }
  func.func @transform_2(%arg0: i32, %arg1: i32) -> (i32, i32) {
    %c0_i32 = arith.constant 0 : i32
    %c0_i32_0 = arith.constant 0 : i32
    %c0_i32_1 = arith.constant 0 : i32
    return %c0_i32, %c0_i32_0 : i32, i32
  }
  func.func @transform_3(%arg0: i32, %arg1: i32) -> (i32, i32) {
    %c0_i32 = arith.constant 0 : i32
    %c0_i32_0 = arith.constant 0 : i32
    %c0_i32_1 = arith.constant 0 : i32
    return %c0_i32, %c0_i32_0 : i32, i32
  }
  func.func @transform_4(%arg0: i32, %arg1: i32) -> (i32, i32, i32) {
    %c0_i32 = arith.constant 0 : i32
    %c0_i32_0 = arith.constant 0 : i32
    %c0_i32_1 = arith.constant 0 : i32
    %c0_i32_2 = arith.constant 0 : i32
    return %c0_i32, %c0_i32_0, %c0_i32_1 : i32, i32, i32
  }
  func.func @transform_5(%arg0: i32, %arg1: i32) -> (i32, i32, i32) {
    %c0_i32 = arith.constant 0 : i32
    %c0_i32_0 = arith.constant 0 : i32
    %c0_i32_1 = arith.constant 0 : i32
    %c0_i32_2 = arith.constant 0 : i32
    return %c0_i32, %c0_i32_0, %c0_i32_1 : i32, i32, i32
  }
  func.func @transform_6(%arg0: i32, %arg1: i32) -> (i32, i32, i32) {
    %c0_i32 = arith.constant 0 : i32
    %c0_i32_0 = arith.constant 0 : i32
    %c0_i32_1 = arith.constant 0 : i32
    %c0_i32_2 = arith.constant 0 : i32
    return %c0_i32, %c0_i32_0, %c0_i32_1 : i32, i32, i32
  }
  func.func @transform_7(%arg0: i32, %arg1: i32) -> (i32, i32, i32) {
    %c0_i32 = arith.constant 0 : i32
    %c0_i32_0 = arith.constant 0 : i32
    %c0_i32_1 = arith.constant 0 : i32
    %c0_i32_2 = arith.constant 0 : i32
    return %c0_i32, %c0_i32_0, %c0_i32_1 : i32, i32, i32
  }
  func.func @transform_8(%arg0: i32, %arg1: i32) -> (i32, i32) {
    %c0_i32 = arith.constant 0 : i32
    %c0_i32_0 = arith.constant 0 : i32
    %c0_i32_1 = arith.constant 0 : i32
    return %c0_i32, %c0_i32_0 : i32, i32
  }
  func.func @transform_9(%arg0: i32, %arg1: i32) -> (i32, i32) {
    %c0_i32 = arith.constant 0 : i32
    %c0_i32_0 = arith.constant 0 : i32
    %c0_i32_1 = arith.constant 0 : i32
    return %c0_i32, %c0_i32_0 : i32, i32
  }
  func.func @transform_10(%arg0: i32, %arg1: i32) -> (i32, i32, i32) {
    %c0_i32 = arith.constant 0 : i32
    %c0_i32_0 = arith.constant 0 : i32
    return %arg0, %arg1, %c0_i32 : i32, i32, i32
  }
}

</mosaic_0001>

<llo_original>
// kernel: tpu_custom_call.1
$region0: #{tpu_custom_call.1}
  #allocation0 [shape = 'u32[]', space=smem, size = 0x4, offset = 0x4, fixed_abs, tag = 'smem constant byte address 0x4 - core index']
  #allocation1 [shape = 'u32[144,128]{1,0:T(1,128)}', space=vmem, size = 0x12000, scoped, tag = 'internal scratch']
  %s0 = inlined_call_operand.hbm [shape: f32[2,8,32], index: 0, kind: input, shape index: {}]
  %s1 = inlined_call_operand.hbm [shape: f32[2,8,32], index: 1, kind: input, shape index: {}]
  %s2 = inlined_call_operand.hbm [shape: f32[1,32], index: 2, kind: input, shape index: {}]
  %s3 = inlined_call_operand.hbm [shape: f32[1,32], index: 3, kind: input, shape index: {}]
  %s4 = inlined_call_operand.hbm [shape: f32[4,32,8], index: 4, kind: input, shape index: {}]
  %s5 = inlined_call_operand.hbm [shape: f32[4,32,8], index: 5, kind: input, shape index: {}]
  %s6 = inlined_call_operand.hbm [shape: f32[4,32,8], index: 6, kind: input, shape index: {}]
  %s7 = inlined_call_operand.hbm [shape: f32[4,8,32], index: 7, kind: input, shape index: {}]
  %s8 = inlined_call_operand.hbm [shape: f32[1,32], index: 8, kind: input, shape index: {}]
  %s9 = inlined_call_operand.hbm [shape: f32[1,32], index: 9, kind: input, shape index: {}]
  %s10 = inlined_call_operand.hbm [shape: f32[2,8,32], index: 10, kind: output, shape index: {}]
  %s11 = sld [smem:[#allocation0]]
  $region113: #{tpu_custom_call.1} parent=0
    _
  %s13 = ssub.s32 1, %s11
  %s14 = scalar_select 0, %s13, %s11
  $region1: #{tpu_custom_call.1} parent=0
    #allocation2 [shape = 'u8[8192]{0}', space=vmem, size = 0x2000, scoped, tag = 'input window, operand 0']
    #allocation3 [shape = 's32[2]{0}', space=sflag, size = 0x8, scoped, tag = 'scoped memory for tpu_custom_call.1']
    #allocation4 [shape = 's32[2]{0}', space=sflag, size = 0x8, scoped, tag = 'scoped memory for tpu_custom_call.1']
    #allocation5 [shape = 'u8[8192]{0}', space=vmem, size = 0x2000, scoped, tag = 'input window, operand 1']
    #allocation6 [shape = 's32[2]{0}', space=sflag, size = 0x8, scoped, tag = 'scoped memory for tpu_custom_call.1']
    #allocation7 [shape = 'u8[512]{0}', space=vmem, size = 0x400, scoped, tag = 'input window, operand 2, single buffered']
    #allocation8 [shape = 'u8[512]{0}', space=vmem, size = 0x400, scoped, tag = 'input window, operand 3, single buffered']
    #allocation9 [shape = 's32[1]{0}', space=sflag, size = 0x4, scoped, tag = 'scoped memory for tpu_custom_call.1']
    #allocation10 [shape = 'u8[65536]{0}', space=vmem, size = 0x10000, scoped, tag = 'input window, operand 4, single buffered']
    #allocation11 [shape = 'u8[65536]{0}', space=vmem, size = 0x10000, scoped, tag = 'input window, operand 5, single buffered']
    #allocation12 [shape = 's32[1]{0}', space=sflag, size = 0x4, scoped, tag = 'scoped memory for tpu_custom_call.1']
    #allocation13 [shape = 'u8[65536]{0}', space=vmem, size = 0x10000, scoped, tag = 'input window, operand 6, single buffered']
    #allocation14 [shape = 'u8[16384]{0}', space=vmem, size = 0x4000, scoped, tag = 'input window, operand 7, single buffered']
    #allocation15 [shape = 's32[1]{0}', space=sflag, size = 0x4, scoped, tag = 'scoped memory for tpu_custom_call.1']
    #allocation16 [shape = 'u8[512]{0}', space=vmem, size = 0x400, scoped, tag = 'input window, operand 8, single buffered']
    #allocation17 [shape = 'u8[512]{0}', space=vmem, size = 0x400, scoped, tag = 'input window, operand 9, single buffered']
    #allocation18 [shape = 's32[1]{0}', space=sflag, size = 0x4, scoped, tag = 'scoped memory for tpu_custom_call.1']
    #allocation19 [shape = 'u8[8192]{0}', space=vmem, size = 0x2000, scoped, tag = 'output window, operand 0']
    %15 = vsyncpa [#allocation3], 0
    %s16 = scalar_lea.sflag [#allocation3], 1
    %17 = vsyncpa %s16, 0
    %18 = vsyncpa [#allocation6], 0
    %s19 = scalar_lea.sflag [#allocation6], 1
    %20 = vsyncpa %s19, 0
    %21 = vsyncpa [#allocation9], 0
    %22 = vsyncpa [#allocation12], 0
    %23 = vsyncpa [#allocation15], 0
    %24 = vsyncpa [#allocation18], 0
    %25 = vsyncpa [#allocation4], 0
    %s26 = scalar_lea.sflag [#allocation4], 1
    %27 = vsyncpa %s26, 0
    loop: start=0, step=1, limit=4
    $region2: #{tpu_custom_call.1} parent=1 // loop_pre_header
      _
    $region3: #{tpu_custom_call.1} parent=1 // loop_header
      %s29 = sphi 0, %s33
      %p30 = scmp.ge.s32.totalorder %s29, 4
      %s36 = sphi 0, %s48
      %s37 = sphi 0, %s44
      %s38 = sphi 0, %s36
      %s39 = sphi 0, %s37
      %s40 = sphi 0, %s38
      %s41 = sphi 0, %s39
      %s53 = sphi 0, %s55
      %s56 = sphi 0, %s53
      %s57 = sphi 0, %s56
      %s73 = sphi 0, %s57
      %s79 = sphi 0, %s81
      %s82 = sphi 0, %s79
      %s83 = sphi 0, %s82
      %s99 = sphi 0, %s83
      %s103 = sphi 0, %s103
      %s105 = sphi 0, %s103
      %s106 = sphi 0, %s105
      %s120 = sphi 0, %s106
      %s124 = sphi 0, %s124
      %s126 = sphi 0, %s124
      %s127 = sphi 0, %s126
      %s141 = sphi 0, %s127
      %s145 = sphi 0, %s145
      %s147 = sphi 0, %s145
      %s148 = sphi 0, %s147
      %s162 = sphi 0, %s148
      %s166 = sphi 0, %s166
      %s168 = sphi 0, %s166
      %s169 = sphi 0, %s168
      %s183 = sphi 0, %s169
      %s187 = sphi 0, %s187
      %s189 = sphi 0, %s187
      %s190 = sphi 0, %s189
      %s204 = sphi 0, %s190
      %s208 = sphi 0, %s208
      %s210 = sphi 0, %s208
      %s211 = sphi 0, %s210
      %s225 = sphi 0, %s211
      %s229 = sphi 0, %s229
      %s231 = sphi 0, %s229
      %s232 = sphi 0, %s231
      %s246 = sphi 0, %s232
      %s250 = sphi 0, %s250
      %s252 = sphi 0, %s250
      %s253 = sphi 0, %s252
      %s267 = sphi 0, %s253
      %s275 = sphi 0, %s277
      %s278 = sphi 0, %s275
      %s279 = sphi 0, %s278
      %s295 = sphi 0, %s279
    $region4: #{tpu_custom_call.1} parent=1 // loop_header_branch
      %32 = sbr.rel (%p30) target = $region8
    $region5: #{tpu_custom_call.1} parent=1 // loop_body
      %s34 = ssub.s32 %s29, 1
      %s35 = ssub.s32 %s29, 2
      %s42 = sadd.s32 1, %s37
      %p43 = scmp.ge.s32.totalorder %s42, 1
      %s44 = scalar_select %p43, 0, %s42
      %s45 = sadd.s32 1, %s36
      %s46 = scalar_select %p43, %s45, %s36
      %p47 = scmp.ge.s32.totalorder %s46, 2
      %s48 = scalar_select %p47, 0, %s46
      %s49 = ssub.s32 %s36, %s48
      %s50 = ssub.s32 %s37, %s44
      %s51 = sor.u32 %s49, %s50
      %p52 = scmp.eq.s32.totalorder %s51, 0
      %s54 = sadd.s32 %s53, 1
      %s55 = scalar_select %p52, %s53, %s54
      %p58 = pneg %p52
      %p59 = scmp.eq.s32.totalorder %s29, 1
      %p60 = por %p58, %p59
      %p61 = scmp.ne.s32.totalorder %s53, %s56
      %p62 = scmp.eq.s32.totalorder %s29, 0
      %p63 = por %p61, %p62
      %p64 = scmp.ne.s32.totalorder %s53, %s56
      %p65 = scmp.eq.s32.totalorder %s34, 1
      %p66 = por %p64, %p65
      %p67 = scmp.ne.s32.totalorder %s56, %s57
      %p68 = scmp.eq.s32.totalorder %s34, 0
      %p69 = por %p67, %p68
      %p70 = scmp.ne.s32.totalorder %s56, %s57
      %p71 = scmp.eq.s32.totalorder %s35, 1
      %p72 = por %p70, %p71
      %p74 = scmp.ne.s32.totalorder %s57, %s73
      %p75 = scmp.eq.s32.totalorder %s35, 0
      %p76 = por %p74, %p75
      %s77 = ssub.s32 %s36, %s48
      %p78 = scmp.eq.s32.totalorder %s77, 0
      %s80 = sadd.s32 %s79, 1
      %s81 = scalar_select %p78, %s79, %s80
      %p84 = pneg %p78
      %p85 = scmp.eq.s32.totalorder %s29, 1
      %p86 = por %p84, %p85
      %p87 = scmp.ne.s32.totalorder %s79, %s82
      %p88 = scmp.eq.s32.totalorder %s29, 0
      %p89 = por %p87, %p88
      %p90 = scmp.ne.s32.totalorder %s79, %s82
      %p91 = scmp.eq.s32.totalorder %s34, 1
      %p92 = por %p90, %p91
      %p93 = scmp.ne.s32.totalorder %s82, %s83
      %p94 = scmp.eq.s32.totalorder %s34, 0
      %p95 = por %p93, %p94
      %p96 = scmp.ne.s32.totalorder %s82, %s83
      %p97 = scmp.eq.s32.totalorder %s35, 1
      %p98 = por %p96, %p97
      %p100 = scmp.ne.s32.totalorder %s83, %s99
      %p101 = scmp.eq.s32.totalorder %s35, 0
      %p102 = por %p100, %p101
      %s104 = sadd.s32 %s103, 1
      %p107 = scmp.eq.s32.totalorder %s29, 1
      %p108 = scmp.ne.s32.totalorder %s103, %s105
      %p109 = scmp.eq.s32.totalorder %s29, 0
      %p110 = por %p108, %p109
      %p111 = scmp.ne.s32.totalorder %s103, %s105
      %p112 = scmp.eq.s32.totalorder %s34, 1
      %p113 = por %p111, %p112
      %p114 = scmp.ne.s32.totalorder %s105, %s106
      %p115 = scmp.eq.s32.totalorder %s34, 0
      %p116 = por %p114, %p115
      %p117 = scmp.ne.s32.totalorder %s105, %s106
      %p118 = scmp.eq.s32.totalorder %s35, 1
      %p119 = por %p117, %p118
      %p121 = scmp.ne.s32.totalorder %s106, %s120
      %p122 = scmp.eq.s32.totalorder %s35, 0
      %p123 = por %p121, %p122
      %s125 = sadd.s32 %s124, 1
      %p128 = scmp.eq.s32.totalorder %s29, 1
      %p129 = scmp.ne.s32.totalorder %s124, %s126
      %p130 = scmp.eq.s32.totalorder %s29, 0
      %p131 = por %p129, %p130
      %p132 = scmp.ne.s32.totalorder %s124, %s126
      %p133 = scmp.eq.s32.totalorder %s34, 1
      %p134 = por %p132, %p133
      %p135 = scmp.ne.s32.totalorder %s126, %s127
      %p136 = scmp.eq.s32.totalorder %s34, 0
      %p137 = por %p135, %p136
      %p138 = scmp.ne.s32.totalorder %s126, %s127
      %p139 = scmp.eq.s32.totalorder %s35, 1
      %p140 = por %p138, %p139
      %p142 = scmp.ne.s32.totalorder %s127, %s141
      %p143 = scmp.eq.s32.totalorder %s35, 0
      %p144 = por %p142, %p143
      %s146 = sadd.s32 %s145, 1
      %p149 = scmp.eq.s32.totalorder %s29, 1
      %p150 = scmp.ne.s32.totalorder %s145, %s147
      %p151 = scmp.eq.s32.totalorder %s29, 0
      %p152 = por %p150, %p151
      %p153 = scmp.ne.s32.totalorder %s145, %s147
      %p154 = scmp.eq.s32.totalorder %s34, 1
      %p155 = por %p153, %p154
      %p156 = scmp.ne.s32.totalorder %s147, %s148
      %p157 = scmp.eq.s32.totalorder %s34, 0
      %p158 = por %p156, %p157
      %p159 = scmp.ne.s32.totalorder %s147, %s148
      %p160 = scmp.eq.s32.totalorder %s35, 1
      %p161 = por %p159, %p160
      %p163 = scmp.ne.s32.totalorder %s148, %s162
      %p164 = scmp.eq.s32.totalorder %s35, 0
      %p165 = por %p163, %p164
      %s167 = sadd.s32 %s166, 1
      %p170 = scmp.eq.s32.totalorder %s29, 1
      %p171 = scmp.ne.s32.totalorder %s166, %s168
      %p172 = scmp.eq.s32.totalorder %s29, 0
      %p173 = por %p171, %p172
      %p174 = scmp.ne.s32.totalorder %s166, %s168
      %p175 = scmp.eq.s32.totalorder %s34, 1
      %p176 = por %p174, %p175
      %p177 = scmp.ne.s32.totalorder %s168, %s169
      %p178 = scmp.eq.s32.totalorder %s34, 0
      %p179 = por %p177, %p178
      %p180 = scmp.ne.s32.totalorder %s168, %s169
      %p181 = scmp.eq.s32.totalorder %s35, 1
      %p182 = por %p180, %p181
      %p184 = scmp.ne.s32.totalorder %s169, %s183
      %p185 = scmp.eq.s32.totalorder %s35, 0
      %p186 = por %p184, %p185
      %s188 = sadd.s32 %s187, 1
      %p191 = scmp.eq.s32.totalorder %s29, 1
      %p192 = scmp.ne.s32.totalorder %s187, %s189
      %p193 = scmp.eq.s32.totalorder %s29, 0
      %p194 = por %p192, %p193
      %p195 = scmp.ne.s32.totalorder %s187, %s189
      %p196 = scmp.eq.s32.totalorder %s34, 1
      %p197 = por %p195, %p196
      %p198 = scmp.ne.s32.totalorder %s189, %s190
      %p199 = scmp.eq.s32.totalorder %s34, 0
      %p200 = por %p198, %p199
      %p201 = scmp.ne.s32.totalorder %s189, %s190
      %p202 = scmp.eq.s32.totalorder %s35, 1
      %p203 = por %p201, %p202
      %p205 = scmp.ne.s32.totalorder %s190, %s204
      %p206 = scmp.eq.s32.totalorder %s35, 0
      %p207 = por %p205, %p206
      %s209 = sadd.s32 %s208, 1
      %p212 = scmp.eq.s32.totalorder %s29, 1
      %p213 = scmp.ne.s32.totalorder %s208, %s210
      %p214 = scmp.eq.s32.totalorder %s29, 0
      %p215 = por %p213, %p214
      %p216 = scmp.ne.s32.totalorder %s208, %s210
      %p217 = scmp.eq.s32.totalorder %s34, 1
      %p218 = por %p216, %p217
      %p219 = scmp.ne.s32.totalorder %s210, %s211
      %p220 = scmp.eq.s32.totalorder %s34, 0
      %p221 = por %p219, %p220
      %p222 = scmp.ne.s32.totalorder %s210, %s211
      %p223 = scmp.eq.s32.totalorder %s35, 1
      %p224 = por %p222, %p223
      %p226 = scmp.ne.s32.totalorder %s211, %s225
      %p227 = scmp.eq.s32.totalorder %s35, 0
      %p228 = por %p226, %p227
      %s230 = sadd.s32 %s229, 1
      %p233 = scmp.eq.s32.totalorder %s29, 1
      %p234 = scmp.ne.s32.totalorder %s229, %s231
      %p235 = scmp.eq.s32.totalorder %s29, 0
      %p236 = por %p234, %p235
      %p237 = scmp.ne.s32.totalorder %s229, %s231
      %p238 = scmp.eq.s32.totalorder %s34, 1
      %p239 = por %p237, %p238
      %p240 = scmp.ne.s32.totalorder %s231, %s232
      %p241 = scmp.eq.s32.totalorder %s34, 0
      %p242 = por %p240, %p241
      %p243 = scmp.ne.s32.totalorder %s231, %s232
      %p244 = scmp.eq.s32.totalorder %s35, 1
      %p245 = por %p243, %p244
      %p247 = scmp.ne.s32.totalorder %s232, %s246
      %p248 = scmp.eq.s32.totalorder %s35, 0
      %p249 = por %p247, %p248
      %s251 = sadd.s32 %s250, 1
      %p254 = scmp.eq.s32.totalorder %s29, 1
      %p255 = scmp.ne.s32.totalorder %s250, %s252
      %p256 = scmp.eq.s32.totalorder %s29, 0
      %p257 = por %p255, %p256
      %p258 = scmp.ne.s32.totalorder %s250, %s252
      %p259 = scmp.eq.s32.totalorder %s34, 1
      %p260 = por %p258, %p259
      %p261 = scmp.ne.s32.totalorder %s252, %s253
      %p262 = scmp.eq.s32.totalorder %s34, 0
      %p263 = por %p261, %p262
      %p264 = scmp.ne.s32.totalorder %s252, %s253
      %p265 = scmp.eq.s32.totalorder %s35, 1
      %p266 = por %p264, %p265
      %p268 = scmp.ne.s32.totalorder %s253, %s267
      %p269 = scmp.eq.s32.totalorder %s35, 0
      %p270 = por %p268, %p269
      %s271 = ssub.s32 %s36, %s48
      %s272 = ssub.s32 %s37, %s44
      %s273 = sor.u32 %s271, %s272
      %p274 = scmp.eq.s32.totalorder %s273, 0
      %s276 = sadd.s32 %s275, 1
      %s277 = scalar_select %p274, %s275, %s276
      %p280 = pneg %p274
      %p281 = scmp.eq.s32.totalorder %s29, 1
      %p282 = por %p280, %p281
      %p283 = scmp.ne.s32.totalorder %s275, %s278
      %p284 = scmp.eq.s32.totalorder %s29, 0
      %p285 = por %p283, %p284
      %p286 = scmp.ne.s32.totalorder %s275, %s278
      %p287 = scmp.eq.s32.totalorder %s34, 1
      %p288 = por %p286, %p287
      %p289 = scmp.ne.s32.totalorder %s278, %s279
      %p290 = scmp.eq.s32.totalorder %s34, 0
      %p291 = por %p289, %p290
      %p292 = scmp.ne.s32.totalorder %s278, %s279
      %p293 = scmp.eq.s32.totalorder %s35, 1
      %p294 = por %p292, %p293
      %p296 = scmp.ne.s32.totalorder %s279, %s295
      %p297 = scmp.eq.s32.totalorder %s35, 0
      %p298 = por %p296, %p297
      %p299 = scmp.le.s32.totalorder 1, %s29
      %p300 = scmp.lt.s32.totalorder %s29, 3
      %p301 = pnand %p299, %p300
      %p302 = pneg %p301
      // Predicated region
      $region9: #{tpu_custom_call.1} parent=5 // pred_check
        _
      $region10: #{tpu_custom_call.1} parent=5 // pred_check_branch
        %304 = sbr.rel (%p301) target = $region12
      $region11: #{tpu_custom_call.1} parent=5 // pred_region
        %s305 = ssub.s32 %s29, 1
        // Predicated region
        $region13: #{tpu_custom_call.1} parent=11 // pred_check
          %p306 = pneg %p116
        $region14: #{tpu_custom_call.1} parent=11 // pred_check_branch
          %308 = sbr.rel (%p306) target = $region16
        $region15: #{tpu_custom_call.1} parent=11 // pred_region
          %s310 = ssub.s32 16, 16
          %311 = vsyncadd [#allocation6], %s310
          %s313 = sshll.u32 [#allocation7], 4
          %s314 = int_to_ptr.vmem [resolvable:$true] %s313
          %316 = dma.hbm_to_vmem [thread:$0]  %s2, 16, %s314, [#allocation6]
        $region16: #{tpu_custom_call.1} parent=11 // pred_fallthru
          _
        // Predicated region
        $region17: #{tpu_custom_call.1} parent=11 // pred_check
          %p317 = pneg %p137
        $region18: #{tpu_custom_call.1} parent=11 // pred_check_branch
          %319 = sbr.rel (%p317) target = $region20
        $region19: #{tpu_custom_call.1} parent=11 // pred_region
          %s321 = ssub.s32 16, 16
          %322 = vsyncadd [#allocation9], %s321
          %s324 = sshll.u32 [#allocation8], 4
          %s325 = int_to_ptr.vmem [resolvable:$true] %s324
          %327 = dma.hbm_to_vmem [thread:$0]  %s3, 16, %s325, [#allocation9]
        $region20: #{tpu_custom_call.1} parent=11 // pred_fallthru
          _
        // Predicated region
        $region21: #{tpu_custom_call.1} parent=11 // pred_check
          %p328 = pneg %p158
        $region22: #{tpu_custom_call.1} parent=11 // pred_check_branch
          %330 = sbr.rel (%p328) target = $region24
        $region23: #{tpu_custom_call.1} parent=11 // pred_region
          %s332 = ssub.s32 2048, 2048
          %333 = vsyncadd [#allocation9], %s332
          %s334 = sshll.u32 [#allocation10], 4
          %s335 = int_to_ptr.vmem [resolvable:$true] %s334
          %340 = dma.hbm_to_vmem [thread:$0]  %s4, 2048, %s335, [#allocation9], 128, 128, 8
        $region24: #{tpu_custom_call.1} parent=11 // pred_fallthru
          _
        // Predicated region
        $region25: #{tpu_custom_call.1} parent=11 // pred_check
          %p341 = pneg %p179
        $region26: #{tpu_custom_call.1} parent=11 // pred_check_branch
          %343 = sbr.rel (%p341) target = $region28
        $region27: #{tpu_custom_call.1} parent=11 // pred_region
          %s345 = ssub.s32 2048, 2048
          %346 = vsyncadd [#allocation12], %s345
          %s347 = sshll.u32 [#allocation11], 4
          %s348 = int_to_ptr.vmem [resolvable:$true] %s347
          %353 = dma.hbm_to_vmem [thread:$0]  %s5, 2048, %s348, [#allocation12], 128, 128, 8
        $region28: #{tpu_custom_call.1} parent=11 // pred_fallthru
          _
        // Predicated region
        $region29: #{tpu_custom_call.1} parent=11 // pred_check
          %p354 = pneg %p200
        $region30: #{tpu_custom_call.1} parent=11 // pred_check_branch
          %356 = sbr.rel (%p354) target = $region32
        $region31: #{tpu_custom_call.1} parent=11 // pred_region
          %s358 = ssub.s32 2048, 2048
          %359 = vsyncadd [#allocation12], %s358
          %s360 = sshll.u32 [#allocation13], 4
          %s361 = int_to_ptr.vmem [resolvable:$true] %s360
          %366 = dma.hbm_to_vmem [thread:$0]  %s6, 2048, %s361, [#allocation12], 128, 128, 8
        $region32: #{tpu_custom_call.1} parent=11 // pred_fallthru
          _
        // Predicated region
        $region33: #{tpu_custom_call.1} parent=11 // pred_check
          %p367 = pneg %p221
        $region34: #{tpu_custom_call.1} parent=11 // pred_check_branch
          %369 = sbr.rel (%p367) target = $region36
        $region35: #{tpu_custom_call.1} parent=11 // pred_region
          %s371 = ssub.s32 512, 512
          %372 = vsyncadd [#allocation15], %s371
          %s373 = sshll.u32 [#allocation14], 4
          %s374 = int_to_ptr.vmem [resolvable:$true] %s373
          %379 = dma.hbm_to_vmem [thread:$0]  %s7, 512, %s374, [#allocation15], 128, 128, 8
        $region36: #{tpu_custom_call.1} parent=11 // pred_fallthru
          _
        // Predicated region
        $region37: #{tpu_custom_call.1} parent=11 // pred_check
          %p380 = pneg %p242
        $region38: #{tpu_custom_call.1} parent=11 // pred_check_branch
          %382 = sbr.rel (%p380) target = $region40
        $region39: #{tpu_custom_call.1} parent=11 // pred_region
          %s384 = ssub.s32 16, 16
          %385 = vsyncadd [#allocation15], %s384
          %s387 = sshll.u32 [#allocation16], 4
          %s388 = int_to_ptr.vmem [resolvable:$true] %s387
          %390 = dma.hbm_to_vmem [thread:$0]  %s8, 16, %s388, [#allocation15]
        $region40: #{tpu_custom_call.1} parent=11 // pred_fallthru
          _
        // Predicated region
        $region41: #{tpu_custom_call.1} parent=11 // pred_check
          %p391 = pneg %p263
        $region42: #{tpu_custom_call.1} parent=11 // pred_check_branch
          %393 = sbr.rel (%p391) target = $region44
        $region43: #{tpu_custom_call.1} parent=11 // pred_region
          %s395 = ssub.s32 16, 16
          %396 = vsyncadd [#allocation18], %s395
          %s398 = sshll.u32 [#allocation17], 4
          %s399 = int_to_ptr.vmem [resolvable:$true] %s398
          %401 = dma.hbm_to_vmem [thread:$0]  %s9, 16, %s399, [#allocation18]
        $region44: #{tpu_custom_call.1} parent=11 // pred_fallthru
          _
      $region12: #{tpu_custom_call.1} parent=5 // pred_fallthru
        _
      %p402 = scmp.lt.s32.totalorder %s29, 2
      // Predicated region
      $region45: #{tpu_custom_call.1} parent=5 // pred_check
        %p403 = pneg %p402
      $region46: #{tpu_custom_call.1} parent=5 // pred_check_branch
        %405 = sbr.rel (%p403) target = $region48
      $region47: #{tpu_custom_call.1} parent=5 // pred_region
        // Predicated region
        $region49: #{tpu_custom_call.1} parent=47 // pred_check
          %p406 = pneg %p63
        $region50: #{tpu_custom_call.1} parent=47 // pred_check_branch
          %408 = sbr.rel (%p406) target = $region52
        $region51: #{tpu_custom_call.1} parent=47 // pred_region
          %s409 = sand.u32 %s53, 1
          %s410 = scalar_lea.sflag [#allocation3], %s409
          %s411 = sand.u32 %s53, 1
          %s412 = smul.addr %s411, 8
          %s413 = scalar_lea.vmem [#allocation2], %s412
          %s415 = ssub.s32 128, 128
          %416 = vsyncadd %s410, %s415
          %s417 = sadd.s32 %s37, %s36
          %s418 = smul.addr %s417, 128
          %s419 = scalar_lea.hbm %s0, %s418
          %s421 = sshll.u32 %s413, 4
          %s422 = int_to_ptr.vmem [resolvable:$true] %s421
          %424 = dma.hbm_to_vmem [thread:$0]  %s419, 128, %s422, %s410
        $region52: #{tpu_custom_call.1} parent=47 // pred_fallthru
          _
        // Predicated region
        $region53: #{tpu_custom_call.1} parent=47 // pred_check
          %p425 = pneg %p89
        $region54: #{tpu_custom_call.1} parent=47 // pred_check_branch
          %427 = sbr.rel (%p425) target = $region56
        $region55: #{tpu_custom_call.1} parent=47 // pred_region
          %s428 = sand.u32 %s29, 1
          %s429 = scalar_lea.sflag [#allocation6], %s428
          %s430 = sand.u32 %s79, 1
          %s431 = smul.addr %s430, 8
          %s432 = scalar_lea.vmem [#allocation5], %s431
          %s434 = ssub.s32 128, 128
          %435 = vsyncadd %s429, %s434
          %s436 = smul.addr %s36, 128
          %s437 = scalar_lea.hbm %s1, %s436
          %s439 = sshll.u32 %s432, 4
          %s440 = int_to_ptr.vmem [resolvable:$true] %s439
          %442 = dma.hbm_to_vmem [thread:$0]  %s437, 128, %s440, %s429
        $region56: #{tpu_custom_call.1} parent=47 // pred_fallthru
          _
      $region48: #{tpu_custom_call.1} parent=5 // pred_fallthru
        _
      %p443 = scmp.le.s32.totalorder 1, %s29
      %p444 = scmp.lt.s32.totalorder %s29, 3
      %p445 = pnand %p443, %p444
      %p446 = pneg %p445
      // Predicated region
      $region57: #{tpu_custom_call.1} parent=5 // pred_check
        _
      $region58: #{tpu_custom_call.1} parent=5 // pred_check_branch
        %448 = sbr.rel (%p445) target = $region60
      $region59: #{tpu_custom_call.1} parent=5 // pred_region
        %s449 = ssub.s32 %s29, 1
        %s450 = sand.u32 %s56, 1
        %s451 = scalar_lea.sflag [#allocation3], %s450
        %s452 = sand.u32 %s56, 1
        %s453 = smul.addr %s452, 8
        %s454 = scalar_lea.vmem [#allocation2], %s453
        // Predicated region
        $region61: #{tpu_custom_call.1} parent=59 // pred_check
          %p455 = pneg %p69
        $region62: #{tpu_custom_call.1} parent=59 // pred_check_branch
          %457 = sbr.rel (%p455) target = $region64
        $region63: #{tpu_custom_call.1} parent=59 // pred_region
          %458 = dma.done %s451, 128
        $region64: #{tpu_custom_call.1} parent=59 // pred_fallthru
          _
        %s459 = sand.u32 %s34, 1
        %s460 = scalar_lea.sflag [#allocation6], %s459
        %s461 = sand.u32 %s82, 1
        %s462 = smul.addr %s461, 8
        %s463 = scalar_lea.vmem [#allocation5], %s462
        // Predicated region
        $region65: #{tpu_custom_call.1} parent=59 // pred_check
          %p464 = pneg %p95
        $region66: #{tpu_custom_call.1} parent=59 // pred_check_branch
          %466 = sbr.rel (%p464) target = $region68
        $region67: #{tpu_custom_call.1} parent=59 // pred_region
          %467 = dma.done %s460, 128
        $region68: #{tpu_custom_call.1} parent=59 // pred_fallthru
          _
        // Predicated region
        $region69: #{tpu_custom_call.1} parent=59 // pred_check
          %p468 = pneg %p116
        $region70: #{tpu_custom_call.1} parent=59 // pred_check_branch
          %470 = sbr.rel (%p468) target = $region72
        $region71: #{tpu_custom_call.1} parent=59 // pred_region
          %471 = dma.done [#allocation6], 16
        $region72: #{tpu_custom_call.1} parent=59 // pred_fallthru
          _
        // Predicated region
        $region73: #{tpu_custom_call.1} parent=59 // pred_check
          %p472 = pneg %p137
        $region74: #{tpu_custom_call.1} parent=59 // pred_check_branch
          %474 = sbr.rel (%p472) target = $region76
        $region75: #{tpu_custom_call.1} parent=59 // pred_region
          %475 = dma.done [#allocation9], 16
        $region76: #{tpu_custom_call.1} parent=59 // pred_fallthru
          _
        // Predicated region
        $region77: #{tpu_custom_call.1} parent=59 // pred_check
          %p476 = pneg %p158
        $region78: #{tpu_custom_call.1} parent=59 // pred_check_branch
          %478 = sbr.rel (%p476) target = $region80
        $region79: #{tpu_custom_call.1} parent=59 // pred_region
          %479 = dma.done [#allocation9], 2048
        $region80: #{tpu_custom_call.1} parent=59 // pred_fallthru
          _
        // Predicated region
        $region81: #{tpu_custom_call.1} parent=59 // pred_check
          %p480 = pneg %p179
        $region82: #{tpu_custom_call.1} parent=59 // pred_check_branch
          %482 = sbr.rel (%p480) target = $region84
        $region83: #{tpu_custom_call.1} parent=59 // pred_region
          %483 = dma.done [#allocation12], 2048
        $region84: #{tpu_custom_call.1} parent=59 // pred_fallthru
          _
        // Predicated region
        $region85: #{tpu_custom_call.1} parent=59 // pred_check
          %p484 = pneg %p200
        $region86: #{tpu_custom_call.1} parent=59 // pred_check_branch
          %486 = sbr.rel (%p484) target = $region88
        $region87: #{tpu_custom_call.1} parent=59 // pred_region
          %487 = dma.done [#allocation12], 2048
        $region88: #{tpu_custom_call.1} parent=59 // pred_fallthru
          _
        // Predicated region
        $region89: #{tpu_custom_call.1} parent=59 // pred_check
          %p488 = pneg %p221
        $region90: #{tpu_custom_call.1} parent=59 // pred_check_branch
          %490 = sbr.rel (%p488) target = $region92
        $region91: #{tpu_custom_call.1} parent=59 // pred_region
          %491 = dma.done [#allocation15], 512
        $region92: #{tpu_custom_call.1} parent=59 // pred_fallthru
          _
        // Predicated region
        $region93: #{tpu_custom_call.1} parent=59 // pred_check
          %p492 = pneg %p242
        $region94: #{tpu_custom_call.1} parent=59 // pred_check_branch
          %494 = sbr.rel (%p492) target = $region96
        $region95: #{tpu_custom_call.1} parent=59 // pred_region
          %495 = dma.done [#allocation15], 16
        $region96: #{tpu_custom_call.1} parent=59 // pred_fallthru
          _
        // Predicated region
        $region97: #{tpu_custom_call.1} parent=59 // pred_check
          %p496 = pneg %p263
        $region98: #{tpu_custom_call.1} parent=59 // pred_check_branch
          %498 = sbr.rel (%p496) target = $region100
        $region99: #{tpu_custom_call.1} parent=59 // pred_region
          %499 = dma.done [#allocation18], 16
        $region100: #{tpu_custom_call.1} parent=59 // pred_fallthru
          _
        %s500 = sand.u32 %s56, 1
        %s501 = scalar_lea.sflag [#allocation3], %s500
        %s502 = sand.u32 %s56, 1
        %s503 = smul.addr %s502, 8
        %s504 = scalar_lea.vmem [#allocation2], %s503
        %p505 = pneg %p69
        %p506 = pneg %p66
        %s507 = sand.u32 %s34, 1
        %s508 = scalar_lea.sflag [#allocation6], %s507
        %s509 = sand.u32 %s82, 1
        %s510 = smul.addr %s509, 8
        %s511 = scalar_lea.vmem [#allocation5], %s510
        %p512 = pneg %p95
        %p513 = pneg %p92
        %p514 = pneg %p116
        %p515 = pneg %p113
        %p516 = pneg %p137
        %p517 = pneg %p134
        %p518 = pneg %p158
        %p519 = pneg %p155
        %p520 = pneg %p179
        %p521 = pneg %p176
        %p522 = pneg %p200
        %p523 = pneg %p197
        %p524 = pneg %p221
        %p525 = pneg %p218
        %p526 = pneg %p242
        %p527 = pneg %p239
        %p528 = pneg %p263
        %p529 = pneg %p260
        %p530 = pneg %p291
        %p531 = pneg %p288
        %s532 = sand.u32 %s278, 1
        %s533 = scalar_lea.sflag [#allocation4], %s532
        %s534 = sand.u32 %s278, 1
        %s535 = smul.addr %s534, 8
        %s536 = scalar_lea.vmem [#allocation19], %s535
        %v537 = vld [vmem:[%s454] sm:$0xff]
        %v538 = vld [vmem:[%s463] sm:$0xff]
        %v539 = vld [vmem:[#allocation7] sm:$0x1]
        %v540 = vld [vmem:[#allocation8] sm:$0x1]
        %vm541 = vcmask 261120
        %v542 = vsel %vm541, %v537, 0.0
        %543 = vadd.xlane.f32.xlu0 %v542
        %v544 = vpop.xlane.xlu0 %543
        %v545 = vrcp.pop 32.0
        %v546 = vmul.f32 %v544, %v545
        %v547 = vsub.f32 %v537, %v546
        %v548 = vmul.f32 %v547, %v547
        %v549 = vsel %vm541, %v548, 0.0
        %550 = vadd.xlane.f32.xlu0 %v549
        %v551 = vpop.xlane.xlu0 %550
        %v552 = vmul.f32 %v551, %v545
        %v553 = vadd.f32 %v552, 1e-05
        %v554 = vrsqrt.pop %v553
        %v555 = vmul.f32 %v547, %v554
        %v557 = vlaneseq
        %v558 = vshrl.u32 %v557, 7
        %v559 = vsub.s32 0, %v558
        %v560 = vrot.slane %v539, %v559
        %v562 = vmul.f32 %v555, %v560
        %v564 = vlaneseq
        %v565 = vshrl.u32 %v564, 7
        %v566 = vsub.s32 0, %v565
        %v567 = vrot.slane %v540, %v566
        %v569 = vadd.f32 %v562, %v567
        %v570 = vsel %vm541, %v538, 0.0
        %571 = vadd.xlane.f32.xlu0 %v570
        %v572 = vpop.xlane.xlu0 %571
        %v573 = vmul.f32 %v572, %v545
        %v574 = vsub.f32 %v538, %v573
        %v575 = vmul.f32 %v574, %v574
        %v576 = vsel %vm541, %v575, 0.0
        %577 = vadd.xlane.f32.xlu0 %v576
        %v578 = vpop.xlane.xlu0 %577
        %v579 = vmul.f32 %v578, %v545
        %v580 = vadd.f32 %v579, 1e-05
        %v581 = vrsqrt.pop %v580
        %v582 = vmul.f32 %v574, %v581
        %v583 = vmul.f32 %v582, %v560
        %v584 = vadd.f32 %v583, %v567
        %v585 = vld [vmem:[#allocation10] sm:$0xff]
        %v586 = vld [vmem:[#allocation10 + $0x8] sm:$0xff]
        %v587 = vld [vmem:[#allocation10 + $0x10] sm:$0xff]
        %v588 = vld [vmem:[#allocation10 + $0x18] sm:$0xff]
        %v590 = vsel %vm541, %v569, 0
        %592 = vmatprep.subr.mxu0 0.0
        %593 = vmatpush1.msra.mxu0 %v585
        %594 = vmatprep.subr.mxu0 0.0
        %595 = vmatpush1.msra.mxu0 %v586
        %596 = vmatprep.subr.mxu0 0.0
        %597 = vmatpush1.msra.mxu0 %v587
        %598 = vmatprep.subr.mxu0 0.0
        %599 = vmatpush1.msra.mxu0 %v588
        %600 = vmatprep.subr.mxu0 0.0
        %601 = vmatpush1.msra.mxu0 0.0
        %602 = vmatprep.subr.mxu0 0.0
        %603 = vmatpush1.msra.mxu0 0.0
        %604 = vmatprep.subr.mxu0 0.0
        %605 = vmatpush1.msra.mxu0 0.0
        %606 = vmatprep.subr.mxu0 0.0
        %607 = vmatpush1.msra.mxu0 0.0
        %608 = vmatprep.subr.mxu0 0.0
        %609 = vmatpush1.msra.mxu0 0.0
        %610 = vmatprep.subr.mxu0 0.0
        %611 = vmatpush1.msra.mxu0 0.0
        %612 = vmatprep.subr.mxu0 0.0
        %613 = vmatpush1.msra.mxu0 0.0
        %614 = vmatprep.subr.mxu0 0.0
        %615 = vmatpush1.msra.mxu0 0.0
        %616 = vmatprep.subr.mxu0 0.0
        %617 = vmatpush1.msra.mxu0 0.0
        %618 = vmatprep.subr.mxu0 0.0
        %619 = vmatpush1.msra.mxu0 0.0
        %620 = vmatprep.subr.mxu0 0.0
        %621 = vmatpush1.msra.mxu0 0.0
        %622 = vmatprep.subr.mxu0 0.0
        %623 = vmatpush1.msra.mxu0 0.0
        %624 = vmatprep.subr.mxu0 0.0
        %625 = vmatpush1.msra.mxu0 0.0
        %626 = vmatprep.subr.mxu0 0.0
        %627 = vmatpush1.msra.mxu0 0.0
        %628 = vmatprep.subr.mxu0 0.0
        %629 = vmatpush1.msra.mxu0 0.0
        %630 = vmatprep.subr.mxu0 0.0
        %631 = vmatpush1.msra.mxu0 0.0
        %632 = vmatprep.subr.mxu0 0.0
        %633 = vmatpush1.msra.mxu0 0.0
        %634 = vmatprep.subr.mxu0 0.0
        %635 = vmatpush1.msra.mxu0 0.0
        %636 = vmatprep.subr.mxu0 0.0
        %637 = vmatpush1.msra.mxu0 0.0
        %638 = vmatprep.subr.mxu0 0.0
        %639 = vmatpush1.msra.mxu0 0.0
        %640 = vmatprep.subr.mxu0 0.0
        %641 = vmatpush1.msra.mxu0 0.0
        %642 = vmatprep.subr.mxu0 0.0
        %643 = vmatpush1.msra.mxu0 0.0
        %644 = vmatprep.subr.mxu0 0.0
        %645 = vmatpush1.msra.mxu0 0.0
        %646 = vmatprep.subr.mxu0 0.0
        %647 = vmatpush1.msra.mxu0 0.0
        %648 = vmatprep.subr.mxu0 0.0
        %649 = vmatpush1.msra.mxu0 0.0
        %650 = vmatprep.subr.mxu0 0.0
        %651 = vmatpush1.msra.mxu0 0.0
        %652 = vmatprep.subr.mxu0 0.0
        %653 = vmatpush1.msra.mxu0 0.0
        %654 = vmatprep.subr.mxu0 0.0
        %655 = vmatpush1.msra.mxu0 0.0
        %656 = vmatprep.mubr.f32.mxu0 0.0
        %657 = vmatmul.mubr.f32.gmra.mrb[0].mxu0 %v590
        %v658 = vpop.f32.mrb[0].mxu0
        %v659 = vadd.f32 0.0, %v658
        %v660 = vpop.f32.mrb[0].mxu0
        %661 = vdwg.mxu0
        %v662 = vld [vmem:[#allocation11] sm:$0xff]
        %v663 = vld [vmem:[#allocation11 + $0x8] sm:$0xff]
        %v664 = vld [vmem:[#allocation11 + $0x10] sm:$0xff]
        %v665 = vld [vmem:[#allocation11 + $0x18] sm:$0xff]
        %v667 = vsel %vm541, %v584, 0
        %669 = vmatprep.subr.mxu0 0.0
        %670 = vmatpush1.msra.mxu0 %v662
        %671 = vmatprep.subr.mxu0 0.0
        %672 = vmatpush1.msra.mxu0 %v663
        %673 = vmatprep.subr.mxu0 0.0
        %674 = vmatpush1.msra.mxu0 %v664
        %675 = vmatprep.subr.mxu0 0.0
        %676 = vmatpush1.msra.mxu0 %v665
        %677 = vmatprep.subr.mxu0 0.0
        %678 = vmatpush1.msra.mxu0 0.0
        %679 = vmatprep.subr.mxu0 0.0
        %680 = vmatpush1.msra.mxu0 0.0
        %681 = vmatprep.subr.mxu0 0.0
        %682 = vmatpush1.msra.mxu0 0.0
        %683 = vmatprep.subr.mxu0 0.0
        %684 = vmatpush1.msra.mxu0 0.0
        %685 = vmatprep.subr.mxu0 0.0
        %686 = vmatpush1.msra.mxu0 0.0
        %687 = vmatprep.subr.mxu0 0.0
        %688 = vmatpush1.msra.mxu0 0.0
        %689 = vmatprep.subr.mxu0 0.0
        %690 = vmatpush1.msra.mxu0 0.0
        %691 = vmatprep.subr.mxu0 0.0
        %692 = vmatpush1.msra.mxu0 0.0
        %693 = vmatprep.subr.mxu0 0.0
        %694 = vmatpush1.msra.mxu0 0.0
        %695 = vmatprep.subr.mxu0 0.0
        %696 = vmatpush1.msra.mxu0 0.0
        %697 = vmatprep.subr.mxu0 0.0
        %698 = vmatpush1.msra.mxu0 0.0
        %699 = vmatprep.subr.mxu0 0.0
        %700 = vmatpush1.msra.mxu0 0.0
        %701 = vmatprep.subr.mxu0 0.0
        %702 = vmatpush1.msra.mxu0 0.0
        %703 = vmatprep.subr.mxu0 0.0
        %704 = vmatpush1.msra.mxu0 0.0
        %705 = vmatprep.subr.mxu0 0.0
        %706 = vmatpush1.msra.mxu0 0.0
        %707 = vmatprep.subr.mxu0 0.0
        %708 = vmatpush1.msra.mxu0 0.0
        %709 = vmatprep.subr.mxu0 0.0
        %710 = vmatpush1.msra.mxu0 0.0
        %711 = vmatprep.subr.mxu0 0.0
        %712 = vmatpush1.msra.mxu0 0.0
        %713 = vmatprep.subr.mxu0 0.0
        %714 = vmatpush1.msra.mxu0 0.0
        %715 = vmatprep.subr.mxu0 0.0
        %716 = vmatpush1.msra.mxu0 0.0
        %717 = vmatprep.subr.mxu0 0.0
        %718 = vmatpush1.msra.mxu0 0.0
        %719 = vmatprep.subr.mxu0 0.0
        %720 = vmatpush1.msra.mxu0 0.0
        %721 = vmatprep.subr.mxu0 0.0
        %722 = vmatpush1.msra.mxu0 0.0
        %723 = vmatprep.subr.mxu0 0.0
        %724 = vmatpush1.msra.mxu0 0.0
        %725 = vmatprep.subr.mxu0 0.0
        %726 = vmatpush1.msra.mxu0 0.0
        %727 = vmatprep.subr.mxu0 0.0
        %728 = vmatpush1.msra.mxu0 0.0
        %729 = vmatprep.subr.mxu0 0.0
        %730 = vmatpush1.msra.mxu0 0.0
        %731 = vmatprep.subr.mxu0 0.0
        %732 = vmatpush1.msra.mxu0 0.0
        %733 = vmatprep.mubr.f32.mxu0 0.0
        %734 = vmatmul.mubr.f32.gmra.mrb[0].mxu0 %v667
        %v735 = vpop.f32.mrb[0].mxu0
        %v736 = vadd.f32 0.0, %v735
        %v737 = vpop.f32.mrb[0].mxu0
        %738 = vdwg.mxu0
        %v739 = vld [vmem:[#allocation13] sm:$0xff]
        %v740 = vld [vmem:[#allocation13 + $0x8] sm:$0xff]
        %v741 = vld [vmem:[#allocation13 + $0x10] sm:$0xff]
        %v742 = vld [vmem:[#allocation13 + $0x18] sm:$0xff]
        %743 = vmatprep.subr.mxu0 0.0
        %744 = vmatpush1.msra.mxu0 %v739
        %745 = vmatprep.subr.mxu0 0.0
        %746 = vmatpush1.msra.mxu0 %v740
        %747 = vmatprep.subr.mxu0 0.0
        %748 = vmatpush1.msra.mxu0 %v741
        %749 = vmatprep.subr.mxu0 0.0
        %750 = vmatpush1.msra.mxu0 %v742
        %751 = vmatprep.subr.mxu0 0.0
        %752 = vmatpush1.msra.mxu0 0.0
        %753 = vmatprep.subr.mxu0 0.0
        %754 = vmatpush1.msra.mxu0 0.0
        %755 = vmatprep.subr.mxu0 0.0
        %756 = vmatpush1.msra.mxu0 0.0
        %757 = vmatprep.subr.mxu0 0.0
        %758 = vmatpush1.msra.mxu0 0.0
        %759 = vmatprep.subr.mxu0 0.0
        %760 = vmatpush1.msra.mxu0 0.0
        %761 = vmatprep.subr.mxu0 0.0
        %762 = vmatpush1.msra.mxu0 0.0
        %763 = vmatprep.subr.mxu0 0.0
        %764 = vmatpush1.msra.mxu0 0.0
        %765 = vmatprep.subr.mxu0 0.0
        %766 = vmatpush1.msra.mxu0 0.0
        %767 = vmatprep.subr.mxu0 0.0
        %768 = vmatpush1.msra.mxu0 0.0
        %769 = vmatprep.subr.mxu0 0.0
        %770 = vmatpush1.msra.mxu0 0.0
        %771 = vmatprep.subr.mxu0 0.0
        %772 = vmatpush1.msra.mxu0 0.0
        %773 = vmatprep.subr.mxu0 0.0
        %774 = vmatpush1.msra.mxu0 0.0
        %775 = vmatprep.subr.mxu0 0.0
        %776 = vmatpush1.msra.mxu0 0.0
        %777 = vmatprep.subr.mxu0 0.0
        %778 = vmatpush1.msra.mxu0 0.0
        %779 = vmatprep.subr.mxu0 0.0
        %780 = vmatpush1.msra.mxu0 0.0
        %781 = vmatprep.subr.mxu0 0.0
        %782 = vmatpush1.msra.mxu0 0.0
        %783 = vmatprep.subr.mxu0 0.0
        %784 = vmatpush1.msra.mxu0 0.0
        %785 = vmatprep.subr.mxu0 0.0
        %786 = vmatpush1.msra.mxu0 0.0
        %787 = vmatprep.subr.mxu0 0.0
        %788 = vmatpush1.msra.mxu0 0.0
        %789 = vmatprep.subr.mxu0 0.0
        %790 = vmatpush1.msra.mxu0 0.0
        %791 = vmatprep.subr.mxu0 0.0
        %792 = vmatpush1.msra.mxu0 0.0
        %793 = vmatprep.subr.mxu0 0.0
        %794 = vmatpush1.msra.mxu0 0.0
        %795 = vmatprep.subr.mxu0 0.0
        %796 = vmatpush1.msra.mxu0 0.0
        %797 = vmatprep.subr.mxu0 0.0
        %798 = vmatpush1.msra.mxu0 0.0
        %799 = vmatprep.subr.mxu0 0.0
        %800 = vmatpush1.msra.mxu0 0.0
        %801 = vmatprep.subr.mxu0 0.0
        %802 = vmatpush1.msra.mxu0 0.0
        %803 = vmatprep.subr.mxu0 0.0
        %804 = vmatpush1.msra.mxu0 0.0
        %805 = vmatprep.subr.mxu0 0.0
        %806 = vmatpush1.msra.mxu0 0.0
        %807 = vmatprep.mubr.f32.mxu0 0.0
        %808 = vmatmul.mubr.f32.gmra.mrb[0].mxu0 %v667
        %v809 = vpop.f32.mrb[0].mxu0
        %v810 = vadd.f32 0.0, %v809
        %v811 = vpop.f32.mrb[0].mxu0
        %812 = vdwg.mxu0
        %vm813 = vcmask 64512
        %v815 = vsel %vm813, %v659, 0
        %v818 = vsel %vm813, %v736, 0
        %820 = vmatprep.subr.mxu0 0.0
        %821 = vmatpush1.xpose.msra.mxu0 %v818
        %822 = vmatprep.subr.mxu0 0.0
        %823 = vmatpush1.xpose.msra.mxu0 0.0
        %824 = vmatprep.subr.mxu0 0.0
        %825 = vmatpush1.xpose.msra.mxu0 0.0
        %826 = vmatprep.subr.mxu0 0.0
        %827 = vmatpush1.xpose.msra.mxu0 0.0
        %828 = vmatprep.subr.mxu0 0.0
        %829 = vmatpush1.xpose.msra.mxu0 0.0
        %830 = vmatprep.subr.mxu0 0.0
        %831 = vmatpush1.xpose.msra.mxu0 0.0
        %832 = vmatprep.subr.mxu0 0.0
        %833 = vmatpush1.xpose.msra.mxu0 0.0
        %834 = vmatprep.subr.mxu0 0.0
        %835 = vmatpush1.xpose.msra.mxu0 0.0
        %836 = vmatprep.subr.mxu0 0.0
        %837 = vmatpush1.xpose.msra.mxu0 0.0
        %838 = vmatprep.subr.mxu0 0.0
        %839 = vmatpush1.xpose.msra.mxu0 0.0
        %840 = vmatprep.subr.mxu0 0.0
        %841 = vmatpush1.xpose.msra.mxu0 0.0
        %842 = vmatprep.subr.mxu0 0.0
        %843 = vmatpush1.xpose.msra.mxu0 0.0
        %844 = vmatprep.subr.mxu0 0.0
        %845 = vmatpush1.xpose.msra.mxu0 0.0
        %846 = vmatprep.subr.mxu0 0.0
        %847 = vmatpush1.xpose.msra.mxu0 0.0
        %848 = vmatprep.subr.mxu0 0.0
        %849 = vmatpush1.xpose.msra.mxu0 0.0
        %850 = vmatprep.subr.mxu0 0.0
        %851 = vmatpush1.xpose.msra.mxu0 0.0
        %852 = vmatprep.subr.mxu0 0.0
        %853 = vmatpush1.xpose.msra.mxu0 0.0
        %854 = vmatprep.subr.mxu0 0.0
        %855 = vmatpush1.xpose.msra.mxu0 0.0
        %856 = vmatprep.subr.mxu0 0.0
        %857 = vmatpush1.xpose.msra.mxu0 0.0
        %858 = vmatprep.subr.mxu0 0.0
        %859 = vmatpush1.xpose.msra.mxu0 0.0
        %860 = vmatprep.subr.mxu0 0.0
        %861 = vmatpush1.xpose.msra.mxu0 0.0
        %862 = vmatprep.subr.mxu0 0.0
        %863 = vmatpush1.xpose.msra.mxu0 0.0
        %864 = vmatprep.subr.mxu0 0.0
        %865 = vmatpush1.xpose.msra.mxu0 0.0
        %866 = vmatprep.subr.mxu0 0.0
        %867 = vmatpush1.xpose.msra.mxu0 0.0
        %868 = vmatprep.subr.mxu0 0.0
        %869 = vmatpush1.xpose.msra.mxu0 0.0
        %870 = vmatprep.subr.mxu0 0.0
        %871 = vmatpush1.xpose.msra.mxu0 0.0
        %872 = vmatprep.subr.mxu0 0.0
        %873 = vmatpush1.xpose.msra.mxu0 0.0
        %874 = vmatprep.subr.mxu0 0.0
        %875 = vmatpush1.xpose.msra.mxu0 0.0
        %876 = vmatprep.subr.mxu0 0.0
        %877 = vmatpush1.xpose.msra.mxu0 0.0
        %878 = vmatprep.subr.mxu0 0.0
        %879 = vmatpush1.xpose.msra.mxu0 0.0
        %880 = vmatprep.subr.mxu0 0.0
        %881 = vmatpush1.xpose.msra.mxu0 0.0
        %882 = vmatprep.subr.mxu0 0.0
        %883 = vmatpush1.xpose.msra.mxu0 0.0
        %884 = vmatprep.mubr.f32.mxu0 0.0
        %885 = vmatmul.mubr.f32.gmra.mrb[0].mxu0 %v815
        %v886 = vpop.f32.mrb[0].mxu0
        %v887 = vadd.f32 0.0, %v886
        %v888 = vpop.f32.mrb[0].mxu0
        %889 = vdwg.mxu0
        %v890 = vsel %vm813, %v887, -inf
        %891 = vmax.xlane.f32.xlu0 %v890
        %v892 = vpop.xlane.xlu0 %891
        %v893 = vsub.f32 %v887, %v892
        %v894 = vmul.f32 %v893, 1.442695
        %v895 = vpow.pop %v894
        %v896 = vsel %vm813, %v895, 0.0
        %897 = vadd.xlane.f32.xlu0 %v896
        %v898 = vpop.xlane.xlu0 %897
        %v899 = vrcp.pop %v898
        %v900 = vmul.f32 %v895, %v899
        %v902 = vsel %vm813, %v900, 0
        %904 = vmatprep.subr.mxu0 0.0
        %905 = vmatpush1.msra.mxu0 %v810
        %906 = vmatprep.subr.mxu0 0.0
        %907 = vmatpush1.msra.mxu0 0.0
        %908 = vmatprep.subr.mxu0 0.0
        %909 = vmatpush1.msra.mxu0 0.0
        %910 = vmatprep.subr.mxu0 0.0
        %911 = vmatpush1.msra.mxu0 0.0
        %912 = vmatprep.subr.mxu0 0.0
        %913 = vmatpush1.msra.mxu0 0.0
        %914 = vmatprep.subr.mxu0 0.0
        %915 = vmatpush1.msra.mxu0 0.0
        %916 = vmatprep.subr.mxu0 0.0
        %917 = vmatpush1.msra.mxu0 0.0
        %918 = vmatprep.subr.mxu0 0.0
        %919 = vmatpush1.msra.mxu0 0.0
        %920 = vmatprep.subr.mxu0 0.0
        %921 = vmatpush1.msra.mxu0 0.0
        %922 = vmatprep.subr.mxu0 0.0
        %923 = vmatpush1.msra.mxu0 0.0
        %924 = vmatprep.subr.mxu0 0.0
        %925 = vmatpush1.msra.mxu0 0.0
        %926 = vmatprep.subr.mxu0 0.0
        %927 = vmatpush1.msra.mxu0 0.0
        %928 = vmatprep.subr.mxu0 0.0
        %929 = vmatpush1.msra.mxu0 0.0
        %930 = vmatprep.subr.mxu0 0.0
        %931 = vmatpush1.msra.mxu0 0.0
        %932 = vmatprep.subr.mxu0 0.0
        %933 = vmatpush1.msra.mxu0 0.0
        %934 = vmatprep.subr.mxu0 0.0
        %935 = vmatpush1.msra.mxu0 0.0
        %936 = vmatprep.subr.mxu0 0.0
        %937 = vmatpush1.msra.mxu0 0.0
        %938 = vmatprep.subr.mxu0 0.0
        %939 = vmatpush1.msra.mxu0 0.0
        %940 = vmatprep.subr.mxu0 0.0
        %941 = vmatpush1.msra.mxu0 0.0
        %942 = vmatprep.subr.mxu0 0.0
        %943 = vmatpush1.msra.mxu0 0.0
        %944 = vmatprep.subr.mxu0 0.0
        %945 = vmatpush1.msra.mxu0 0.0
        %946 = vmatprep.subr.mxu0 0.0
        %947 = vmatpush1.msra.mxu0 0.0
        %948 = vmatprep.subr.mxu0 0.0
        %949 = vmatpush1.msra.mxu0 0.0
        %950 = vmatprep.subr.mxu0 0.0
        %951 = vmatpush1.msra.mxu0 0.0
        %952 = vmatprep.subr.mxu0 0.0
        %953 = vmatpush1.msra.mxu0 0.0
        %954 = vmatprep.subr.mxu0 0.0
        %955 = vmatpush1.msra.mxu0 0.0
        %956 = vmatprep.subr.mxu0 0.0
        %957 = vmatpush1.msra.mxu0 0.0
        %958 = vmatprep.subr.mxu0 0.0
        %959 = vmatpush1.msra.mxu0 0.0
        %960 = vmatprep.subr.mxu0 0.0
        %961 = vmatpush1.msra.mxu0 0.0
        %962 = vmatprep.subr.mxu0 0.0
        %963 = vmatpush1.msra.mxu0 0.0
        %964 = vmatprep.subr.mxu0 0.0
        %965 = vmatpush1.msra.mxu0 0.0
        %966 = vmatprep.subr.mxu0 0.0
        %967 = vmatpush1.msra.mxu0 0.0
        %968 = vmatprep.mubr.f32.mxu0 0.0
        %969 = vmatmul.mubr.f32.gmra.mrb[0].mxu0 %v902
        %v970 = vpop.f32.mrb[0].mxu0
        %v971 = vadd.f32 0.0, %v970
        %v972 = vpop.f32.mrb[0].mxu0
        %973 = vdwg.mxu0
        %v974 = vld [vmem:[#allocation14] sm:$0xff]
        %s975 = scalar_lea.vmem [#allocation10], 32
        %v976 = vld [vmem:[%s975] sm:$0xff]
        %v977 = vld [vmem:[%s975 + $0x8] sm:$0xff]
        %v978 = vld [vmem:[%s975 + $0x10] sm:$0xff]
        %v979 = vld [vmem:[%s975 + $0x18] sm:$0xff]
        %980 = vmatprep.subr.mxu0 0.0
        %981 = vmatpush1.msra.mxu0 %v976
        %982 = vmatprep.subr.mxu0 0.0
        %983 = vmatpush1.msra.mxu0 %v977
        %984 = vmatprep.subr.mxu0 0.0
        %985 = vmatpush1.msra.mxu0 %v978
        %986 = vmatprep.subr.mxu0 0.0
        %987 = vmatpush1.msra.mxu0 %v979
        %988 = vmatprep.subr.mxu0 0.0
        %989 = vmatpush1.msra.mxu0 0.0
        %990 = vmatprep.subr.mxu0 0.0
        %991 = vmatpush1.msra.mxu0 0.0
        %992 = vmatprep.subr.mxu0 0.0
        %993 = vmatpush1.msra.mxu0 0.0
        %994 = vmatprep.subr.mxu0 0.0
        %995 = vmatpush1.msra.mxu0 0.0
        %996 = vmatprep.subr.mxu0 0.0
        %997 = vmatpush1.msra.mxu0 0.0
        %998 = vmatprep.subr.mxu0 0.0
        %999 = vmatpush1.msra.mxu0 0.0
        %1000 = vmatprep.subr.mxu0 0.0
        %1001 = vmatpush1.msra.mxu0 0.0
        %1002 = vmatprep.subr.mxu0 0.0
        %1003 = vmatpush1.msra.mxu0 0.0
        %1004 = vmatprep.subr.mxu0 0.0
        %1005 = vmatpush1.msra.mxu0 0.0
        %1006 = vmatprep.subr.mxu0 0.0
        %1007 = vmatpush1.msra.mxu0 0.0
        %1008 = vmatprep.subr.mxu0 0.0
        %1009 = vmatpush1.msra.mxu0 0.0
        %1010 = vmatprep.subr.mxu0 0.0
        %1011 = vmatpush1.msra.mxu0 0.0
        %1012 = vmatprep.subr.mxu0 0.0
        %1013 = vmatpush1.msra.mxu0 0.0
        %1014 = vmatprep.subr.mxu0 0.0
        %1015 = vmatpush1.msra.mxu0 0.0
        %1016 = vmatprep.subr.mxu0 0.0
        %1017 = vmatpush1.msra.mxu0 0.0
        %1018 = vmatprep.subr.mxu0 0.0
        %1019 = vmatpush1.msra.mxu0 0.0
        %1020 = vmatprep.subr.mxu0 0.0
        %1021 = vmatpush1.msra.mxu0 0.0
        %1022 = vmatprep.subr.mxu0 0.0
        %1023 = vmatpush1.msra.mxu0 0.0
        %1024 = vmatprep.subr.mxu0 0.0
        %1025 = vmatpush1.msra.mxu0 0.0
        %1026 = vmatprep.subr.mxu0 0.0
        %1027 = vmatpush1.msra.mxu0 0.0
        %1028 = vmatprep.subr.mxu0 0.0
        %1029 = vmatpush1.msra.mxu0 0.0
        %1030 = vmatprep.subr.mxu0 0.0
        %1031 = vmatpush1.msra.mxu0 0.0
        %1032 = vmatprep.subr.mxu0 0.0
        %1033 = vmatpush1.msra.mxu0 0.0
        %1034 = vmatprep.subr.mxu0 0.0
        %1035 = vmatpush1.msra.mxu0 0.0
        %1036 = vmatprep.subr.mxu0 0.0
        %1037 = vmatpush1.msra.mxu0 0.0
        %1038 = vmatprep.subr.mxu0 0.0
        %1039 = vmatpush1.msra.mxu0 0.0
        %1040 = vmatprep.subr.mxu0 0.0
        %1041 = vmatpush1.msra.mxu0 0.0
        %1042 = vmatprep.subr.mxu0 0.0
        %1043 = vmatpush1.msra.mxu0 0.0
        %1044 = vmatprep.mubr.f32.mxu0 0.0
        %1045 = vmatmul.mubr.f32.gmra.mrb[0].mxu0 %v590
        %v1046 = vpop.f32.mrb[0].mxu0
        %v1047 = vadd.f32 0.0, %v1046
        %v1048 = vpop.f32.mrb[0].mxu0
        %1049 = vdwg.mxu0
        %s1050 = scalar_lea.vmem [#allocation11], 32
        %v1051 = vld [vmem:[%s1050] sm:$0xff]
        %v1052 = vld [vmem:[%s1050 + $0x8] sm:$0xff]
        %v1053 = vld [vmem:[%s1050 + $0x10] sm:$0xff]
        %v1054 = vld [vmem:[%s1050 + $0x18] sm:$0xff]
        %1055 = vmatprep.subr.mxu0 0.0
        %1056 = vmatpush1.msra.mxu0 %v1051
        %1057 = vmatprep.subr.mxu0 0.0
        %1058 = vmatpush1.msra.mxu0 %v1052
        %1059 = vmatprep.subr.mxu0 0.0
        %1060 = vmatpush1.msra.mxu0 %v1053
        %1061 = vmatprep.subr.mxu0 0.0
        %1062 = vmatpush1.msra.mxu0 %v1054
        %1063 = vmatprep.subr.mxu0 0.0
        %1064 = vmatpush1.msra.mxu0 0.0
        %1065 = vmatprep.subr.mxu0 0.0
        %1066 = vmatpush1.msra.mxu0 0.0
        %1067 = vmatprep.subr.mxu0 0.0
        %1068 = vmatpush1.msra.mxu0 0.0
        %1069 = vmatprep.subr.mxu0 0.0
        %1070 = vmatpush1.msra.mxu0 0.0
        %1071 = vmatprep.subr.mxu0 0.0
        %1072 = vmatpush1.msra.mxu0 0.0
        %1073 = vmatprep.subr.mxu0 0.0
        %1074 = vmatpush1.msra.mxu0 0.0
        %1075 = vmatprep.subr.mxu0 0.0
        %1076 = vmatpush1.msra.mxu0 0.0
        %1077 = vmatprep.subr.mxu0 0.0
        %1078 = vmatpush1.msra.mxu0 0.0
        %1079 = vmatprep.subr.mxu0 0.0
        %1080 = vmatpush1.msra.mxu0 0.0
        %1081 = vmatprep.subr.mxu0 0.0
        %1082 = vmatpush1.msra.mxu0 0.0
        %1083 = vmatprep.subr.mxu0 0.0
        %1084 = vmatpush1.msra.mxu0 0.0
        %1085 = vmatprep.subr.mxu0 0.0
        %1086 = vmatpush1.msra.mxu0 0.0
        %1087 = vmatprep.subr.mxu0 0.0
        %1088 = vmatpush1.msra.mxu0 0.0
        %1089 = vmatprep.subr.mxu0 0.0
        %1090 = vmatpush1.msra.mxu0 0.0
        %1091 = vmatprep.subr.mxu0 0.0
        %1092 = vmatpush1.msra.mxu0 0.0
        %1093 = vmatprep.subr.mxu0 0.0
        %1094 = vmatpush1.msra.mxu0 0.0
        %1095 = vmatprep.subr.mxu0 0.0
        %1096 = vmatpush1.msra.mxu0 0.0
        %1097 = vmatprep.subr.mxu0 0.0
        %1098 = vmatpush1.msra.mxu0 0.0
        %1099 = vmatprep.subr.mxu0 0.0
        %1100 = vmatpush1.msra.mxu0 0.0
        %1101 = vmatprep.subr.mxu0 0.0
        %1102 = vmatpush1.msra.mxu0 0.0
        %1103 = vmatprep.subr.mxu0 0.0
        %1104 = vmatpush1.msra.mxu0 0.0
        %1105 = vmatprep.subr.mxu0 0.0
        %1106 = vmatpush1.msra.mxu0 0.0
        %1107 = vmatprep.subr.mxu0 0.0
        %1108 = vmatpush1.msra.mxu0 0.0
        %1109 = vmatprep.subr.mxu0 0.0
        %1110 = vmatpush1.msra.mxu0 0.0
        %1111 = vmatprep.subr.mxu0 0.0
        %1112 = vmatpush1.msra.mxu0 0.0
        %1113 = vmatprep.subr.mxu0 0.0
        %1114 = vmatpush1.msra.mxu0 0.0
        %1115 = vmatprep.subr.mxu0 0.0
        %1116 = vmatpush1.msra.mxu0 0.0
        %1117 = vmatprep.subr.mxu0 0.0
        %1118 = vmatpush1.msra.mxu0 0.0
        %1119 = vmatprep.mubr.f32.mxu0 0.0
        %1120 = vmatmul.mubr.f32.gmra.mrb[0].mxu0 %v667
        %v1121 = vpop.f32.mrb[0].mxu0
        %v1122 = vadd.f32 0.0, %v1121
        %v1123 = vpop.f32.mrb[0].mxu0
        %1124 = vdwg.mxu0
        %s1125 = scalar_lea.vmem [#allocation13], 32
        %v1126 = vld [vmem:[%s1125] sm:$0xff]
        %v1127 = vld [vmem:[%s1125 + $0x8] sm:$0xff]
        %v1128 = vld [vmem:[%s1125 + $0x10] sm:$0xff]
        %v1129 = vld [vmem:[%s1125 + $0x18] sm:$0xff]
        %1130 = vmatprep.subr.mxu0 0.0
        %1131 = vmatpush1.msra.mxu0 %v1126
        %1132 = vmatprep.subr.mxu0 0.0
        %1133 = vmatpush1.msra.mxu0 %v1127
        %1134 = vmatprep.subr.mxu0 0.0
        %1135 = vmatpush1.msra.mxu0 %v1128
        %1136 = vmatprep.subr.mxu0 0.0
        %1137 = vmatpush1.msra.mxu0 %v1129
        %1138 = vmatprep.subr.mxu0 0.0
        %1139 = vmatpush1.msra.mxu0 0.0
        %1140 = vmatprep.subr.mxu0 0.0
        %1141 = vmatpush1.msra.mxu0 0.0
        %1142 = vmatprep.subr.mxu0 0.0
        %1143 = vmatpush1.msra.mxu0 0.0
        %1144 = vmatprep.subr.mxu0 0.0
        %1145 = vmatpush1.msra.mxu0 0.0
        %1146 = vmatprep.subr.mxu0 0.0
        %1147 = vmatpush1.msra.mxu0 0.0
        %1148 = vmatprep.subr.mxu0 0.0
        %1149 = vmatpush1.msra.mxu0 0.0
        %1150 = vmatprep.subr.mxu0 0.0
        %1151 = vmatpush1.msra.mxu0 0.0
        %1152 = vmatprep.subr.mxu0 0.0
        %1153 = vmatpush1.msra.mxu0 0.0
        %1154 = vmatprep.subr.mxu0 0.0
        %1155 = vmatpush1.msra.mxu0 0.0
        %1156 = vmatprep.subr.mxu0 0.0
        %1157 = vmatpush1.msra.mxu0 0.0
        %1158 = vmatprep.subr.mxu0 0.0
        %1159 = vmatpush1.msra.mxu0 0.0
        %1160 = vmatprep.subr.mxu0 0.0
        %1161 = vmatpush1.msra.mxu0 0.0
        %1162 = vmatprep.subr.mxu0 0.0
        %1163 = vmatpush1.msra.mxu0 0.0
        %1164 = vmatprep.subr.mxu0 0.0
        %1165 = vmatpush1.msra.mxu0 0.0
        %1166 = vmatprep.subr.mxu0 0.0
        %1167 = vmatpush1.msra.mxu0 0.0
        %1168 = vmatprep.subr.mxu0 0.0
        %1169 = vmatpush1.msra.mxu0 0.0
        %1170 = vmatprep.subr.mxu0 0.0
        %1171 = vmatpush1.msra.mxu0 0.0
        %1172 = vmatprep.subr.mxu0 0.0
        %1173 = vmatpush1.msra.mxu0 0.0
        %1174 = vmatprep.subr.mxu0 0.0
        %1175 = vmatpush1.msra.mxu0 0.0
        %1176 = vmatprep.subr.mxu0 0.0
        %1177 = vmatpush1.msra.mxu0 0.0
        %1178 = vmatprep.subr.mxu0 0.0
        %1179 = vmatpush1.msra.mxu0 0.0
        %1180 = vmatprep.subr.mxu0 0.0
        %1181 = vmatpush1.msra.mxu0 0.0
        %1182 = vmatprep.subr.mxu0 0.0
        %1183 = vmatpush1.msra.mxu0 0.0
        %1184 = vmatprep.subr.mxu0 0.0
        %1185 = vmatpush1.msra.mxu0 0.0
        %1186 = vmatprep.subr.mxu0 0.0
        %1187 = vmatpush1.msra.mxu0 0.0
        %1188 = vmatprep.subr.mxu0 0.0
        %1189 = vmatpush1.msra.mxu0 0.0
        %1190 = vmatprep.subr.mxu0 0.0
        %1191 = vmatpush1.msra.mxu0 0.0
        %1192 = vmatprep.subr.mxu0 0.0
        %1193 = vmatpush1.msra.mxu0 0.0
        %1194 = vmatprep.mubr.f32.mxu0 0.0
        %1195 = vmatmul.mubr.f32.gmra.mrb[0].mxu0 %v667
        %v1196 = vpop.f32.mrb[0].mxu0
        %v1197 = vadd.f32 0.0, %v1196
        %v1198 = vpop.f32.mrb[0].mxu0
        %1199 = vdwg.mxu0
        %v1201 = vsel %vm813, %v1047, 0
        %v1204 = vsel %vm813, %v1122, 0
        %1206 = vmatprep.subr.mxu0 0.0
        %1207 = vmatpush1.xpose.msra.mxu0 %v1204
        %1208 = vmatprep.subr.mxu0 0.0
        %1209 = vmatpush1.xpose.msra.mxu0 0.0
        %1210 = vmatprep.subr.mxu0 0.0
        %1211 = vmatpush1.xpose.msra.mxu0 0.0
        %1212 = vmatprep.subr.mxu0 0.0
        %1213 = vmatpush1.xpose.msra.mxu0 0.0
        %1214 = vmatprep.subr.mxu0 0.0
        %1215 = vmatpush1.xpose.msra.mxu0 0.0
        %1216 = vmatprep.subr.mxu0 0.0
        %1217 = vmatpush1.xpose.msra.mxu0 0.0
        %1218 = vmatprep.subr.mxu0 0.0
        %1219 = vmatpush1.xpose.msra.mxu0 0.0
        %1220 = vmatprep.subr.mxu0 0.0
        %1221 = vmatpush1.xpose.msra.mxu0 0.0
        %1222 = vmatprep.subr.mxu0 0.0
        %1223 = vmatpush1.xpose.msra.mxu0 0.0
        %1224 = vmatprep.subr.mxu0 0.0
        %1225 = vmatpush1.xpose.msra.mxu0 0.0
        %1226 = vmatprep.subr.mxu0 0.0
        %1227 = vmatpush1.xpose.msra.mxu0 0.0
        %1228 = vmatprep.subr.mxu0 0.0
        %1229 = vmatpush1.xpose.msra.mxu0 0.0
        %1230 = vmatprep.subr.mxu0 0.0
        %1231 = vmatpush1.xpose.msra.mxu0 0.0
        %1232 = vmatprep.subr.mxu0 0.0
        %1233 = vmatpush1.xpose.msra.mxu0 0.0
        %1234 = vmatprep.subr.mxu0 0.0
        %1235 = vmatpush1.xpose.msra.mxu0 0.0
        %1236 = vmatprep.subr.mxu0 0.0
        %1237 = vmatpush1.xpose.msra.mxu0 0.0
        %1238 = vmatprep.subr.mxu0 0.0
        %1239 = vmatpush1.xpose.msra.mxu0 0.0
        %1240 = vmatprep.subr.mxu0 0.0
        %1241 = vmatpush1.xpose.msra.mxu0 0.0
        %1242 = vmatprep.subr.mxu0 0.0
        %1243 = vmatpush1.xpose.msra.mxu0 0.0
        %1244 = vmatprep.subr.mxu0 0.0
        %1245 = vmatpush1.xpose.msra.mxu0 0.0
        %1246 = vmatprep.subr.mxu0 0.0
        %1247 = vmatpush1.xpose.msra.mxu0 0.0
        %1248 = vmatprep.subr.mxu0 0.0
        %1249 = vmatpush1.xpose.msra.mxu0 0.0
        %1250 = vmatprep.subr.mxu0 0.0
        %1251 = vmatpush1.xpose.msra.mxu0 0.0
        %1252 = vmatprep.subr.mxu0 0.0
        %1253 = vmatpush1.xpose.msra.mxu0 0.0
        %1254 = vmatprep.subr.mxu0 0.0
        %1255 = vmatpush1.xpose.msra.mxu0 0.0
        %1256 = vmatprep.subr.mxu0 0.0
        %1257 = vmatpush1.xpose.msra.mxu0 0.0
        %1258 = vmatprep.subr.mxu0 0.0
        %1259 = vmatpush1.xpose.msra.mxu0 0.0
        %1260 = vmatprep.subr.mxu0 0.0
        %1261 = vmatpush1.xpose.msra.mxu0 0.0
        %1262 = vmatprep.subr.mxu0 0.0
        %1263 = vmatpush1.xpose.msra.mxu0 0.0
        %1264 = vmatprep.subr.mxu0 0.0
        %1265 = vmatpush1.xpose.msra.mxu0 0.0
        %1266 = vmatprep.subr.mxu0 0.0
        %1267 = vmatpush1.xpose.msra.mxu0 0.0
        %1268 = vmatprep.subr.mxu0 0.0
        %1269 = vmatpush1.xpose.msra.mxu0 0.0
        %1270 = vmatprep.mubr.f32.mxu0 0.0
        %1271 = vmatmul.mubr.f32.gmra.mrb[0].mxu0 %v1201
        %v1272 = vpop.f32.mrb[0].mxu0
        %v1273 = vadd.f32 0.0, %v1272
        %v1274 = vpop.f32.mrb[0].mxu0
        %1275 = vdwg.mxu0
        %v1276 = vsel %vm813, %v1273, -inf
        %1277 = vmax.xlane.f32.xlu0 %v1276
        %v1278 = vpop.xlane.xlu0 %1277
        %v1279 = vsub.f32 %v1273, %v1278
        %v1280 = vmul.f32 %v1279, 1.442695
        %v1281 = vpow.pop %v1280
        %v1282 = vsel %vm813, %v1281, 0.0
        %1283 = vadd.xlane.f32.xlu0 %v1282
        %v1284 = vpop.xlane.xlu0 %1283
        %v1285 = vrcp.pop %v1284
        %v1286 = vmul.f32 %v1281, %v1285
        %v1288 = vsel %vm813, %v1286, 0
        %1290 = vmatprep.subr.mxu0 0.0
        %1291 = vmatpush1.msra.mxu0 %v1197
        %1292 = vmatprep.subr.mxu0 0.0
        %1293 = vmatpush1.msra.mxu0 0.0
        %1294 = vmatprep.subr.mxu0 0.0
        %1295 = vmatpush1.msra.mxu0 0.0
        %1296 = vmatprep.subr.mxu0 0.0
        %1297 = vmatpush1.msra.mxu0 0.0
        %1298 = vmatprep.subr.mxu0 0.0
        %1299 = vmatpush1.msra.mxu0 0.0
        %1300 = vmatprep.subr.mxu0 0.0
        %1301 = vmatpush1.msra.mxu0 0.0
        %1302 = vmatprep.subr.mxu0 0.0
        %1303 = vmatpush1.msra.mxu0 0.0
        %1304 = vmatprep.subr.mxu0 0.0
        %1305 = vmatpush1.msra.mxu0 0.0
        %1306 = vmatprep.subr.mxu0 0.0
        %1307 = vmatpush1.msra.mxu0 0.0
        %1308 = vmatprep.subr.mxu0 0.0
        %1309 = vmatpush1.msra.mxu0 0.0
        %1310 = vmatprep.subr.mxu0 0.0
        %1311 = vmatpush1.msra.mxu0 0.0
        %1312 = vmatprep.subr.mxu0 0.0
        %1313 = vmatpush1.msra.mxu0 0.0
        %1314 = vmatprep.subr.mxu0 0.0
        %1315 = vmatpush1.msra.mxu0 0.0
        %1316 = vmatprep.subr.mxu0 0.0
        %1317 = vmatpush1.msra.mxu0 0.0
        %1318 = vmatprep.subr.mxu0 0.0
        %1319 = vmatpush1.msra.mxu0 0.0
        %1320 = vmatprep.subr.mxu0 0.0
        %1321 = vmatpush1.msra.mxu0 0.0
        %1322 = vmatprep.subr.mxu0 0.0
        %1323 = vmatpush1.msra.mxu0 0.0
        %1324 = vmatprep.subr.mxu0 0.0
        %1325 = vmatpush1.msra.mxu0 0.0
        %1326 = vmatprep.subr.mxu0 0.0
        %1327 = vmatpush1.msra.mxu0 0.0
        %1328 = vmatprep.subr.mxu0 0.0
        %1329 = vmatpush1.msra.mxu0 0.0
        %1330 = vmatprep.subr.mxu0 0.0
        %1331 = vmatpush1.msra.mxu0 0.0
        %1332 = vmatprep.subr.mxu0 0.0
        %1333 = vmatpush1.msra.mxu0 0.0
        %1334 = vmatprep.subr.mxu0 0.0
        %1335 = vmatpush1.msra.mxu0 0.0
        %1336 = vmatprep.subr.mxu0 0.0
        %1337 = vmatpush1.msra.mxu0 0.0
        %1338 = vmatprep.subr.mxu0 0.0
        %1339 = vmatpush1.msra.mxu0 0.0
        %1340 = vmatprep.subr.mxu0 0.0
        %1341 = vmatpush1.msra.mxu0 0.0
        %1342 = vmatprep.subr.mxu0 0.0
        %1343 = vmatpush1.msra.mxu0 0.0
        %1344 = vmatprep.subr.mxu0 0.0
        %1345 = vmatpush1.msra.mxu0 0.0
        %1346 = vmatprep.subr.mxu0 0.0
        %1347 = vmatpush1.msra.mxu0 0.0
        %1348 = vmatprep.subr.mxu0 0.0
        %1349 = vmatpush1.msra.mxu0 0.0
        %1350 = vmatprep.subr.mxu0 0.0
        %1351 = vmatpush1.msra.mxu0 0.0
        %1352 = vmatprep.subr.mxu0 0.0
        %1353 = vmatpush1.msra.mxu0 0.0
        %1354 = vmatprep.mubr.f32.mxu0 0.0
        %1355 = vmatmul.mubr.f32.gmra.mrb[0].mxu0 %v1288
        %v1356 = vpop.f32.mrb[0].mxu0
        %v1357 = vadd.f32 0.0, %v1356
        %v1358 = vpop.f32.mrb[0].mxu0
        %1359 = vdwg.mxu0
        %s1360 = scalar_lea.vmem [#allocation14], 8
        %v1361 = vld [vmem:[%s1360] sm:$0xff]
        %v1363 = vsel %vm813, %v1357, 0
        %1365 = vmatprep.subr.mxu0 0.0
        %1366 = vmatpush1.msra.mxu0 %v1361
        %1367 = vmatprep.subr.mxu0 0.0
        %1368 = vmatpush1.msra.mxu0 0.0
        %1369 = vmatprep.subr.mxu0 0.0
        %1370 = vmatpush1.msra.mxu0 0.0
        %1371 = vmatprep.subr.mxu0 0.0
        %1372 = vmatpush1.msra.mxu0 0.0
        %1373 = vmatprep.subr.mxu0 0.0
        %1374 = vmatpush1.msra.mxu0 0.0
        %1375 = vmatprep.subr.mxu0 0.0
        %1376 = vmatpush1.msra.mxu0 0.0
        %1377 = vmatprep.subr.mxu0 0.0
        %1378 = vmatpush1.msra.mxu0 0.0
        %1379 = vmatprep.subr.mxu0 0.0
        %1380 = vmatpush1.msra.mxu0 0.0
        %1381 = vmatprep.subr.mxu0 0.0
        %1382 = vmatpush1.msra.mxu0 0.0
        %1383 = vmatprep.subr.mxu0 0.0
        %1384 = vmatpush1.msra.mxu0 0.0
        %1385 = vmatprep.subr.mxu0 0.0
        %1386 = vmatpush1.msra.mxu0 0.0
        %1387 = vmatprep.subr.mxu0 0.0
        %1388 = vmatpush1.msra.mxu0 0.0
        %1389 = vmatprep.subr.mxu0 0.0
        %1390 = vmatpush1.msra.mxu0 0.0
        %1391 = vmatprep.subr.mxu0 0.0
        %1392 = vmatpush1.msra.mxu0 0.0
        %1393 = vmatprep.subr.mxu0 0.0
        %1394 = vmatpush1.msra.mxu0 0.0
        %1395 = vmatprep.subr.mxu0 0.0
        %1396 = vmatpush1.msra.mxu0 0.0
        %1397 = vmatprep.subr.mxu0 0.0
        %1398 = vmatpush1.msra.mxu0 0.0
        %1399 = vmatprep.subr.mxu0 0.0
        %1400 = vmatpush1.msra.mxu0 0.0
        %1401 = vmatprep.subr.mxu0 0.0
        %1402 = vmatpush1.msra.mxu0 0.0
        %1403 = vmatprep.subr.mxu0 0.0
        %1404 = vmatpush1.msra.mxu0 0.0
        %1405 = vmatprep.subr.mxu0 0.0
        %1406 = vmatpush1.msra.mxu0 0.0
        %1407 = vmatprep.subr.mxu0 0.0
        %1408 = vmatpush1.msra.mxu0 0.0
        %1409 = vmatprep.subr.mxu0 0.0
        %1410 = vmatpush1.msra.mxu0 0.0
        %1411 = vmatprep.subr.mxu0 0.0
        %1412 = vmatpush1.msra.mxu0 0.0
        %1413 = vmatprep.subr.mxu0 0.0
        %1414 = vmatpush1.msra.mxu0 0.0
        %1415 = vmatprep.subr.mxu0 0.0
        %1416 = vmatpush1.msra.mxu0 0.0
        %1417 = vmatprep.subr.mxu0 0.0
        %1418 = vmatpush1.msra.mxu0 0.0
        %1419 = vmatprep.subr.mxu0 0.0
        %1420 = vmatpush1.msra.mxu0 0.0
        %1421 = vmatprep.subr.mxu0 0.0
        %1422 = vmatpush1.msra.mxu0 0.0
        %1423 = vmatprep.subr.mxu0 0.0
        %1424 = vmatpush1.msra.mxu0 0.0
        %1425 = vmatprep.subr.mxu0 0.0
        %1426 = vmatpush1.msra.mxu0 0.0
        %1427 = vmatprep.subr.mxu0 0.0
        %1428 = vmatpush1.msra.mxu0 0.0
        %1429 = vmatprep.mubr.f32.mxu0 0.0
        %1430 = vmatmul.mubr.f32.gmra.mrb[0].mxu0 %v1363
        %v1431 = vpop.f32.mrb[0].mxu0
        %v1432 = vadd.f32 0.0, %v1431
        %v1433 = vpop.f32.mrb[0].mxu0
        %1434 = vdwg.mxu0
        %v1436 = vsel %vm813, %v971, 0
        %1438 = vmatprep.subr.mxu0 0.0
        %1439 = vmatpush1.msra.mxu0 %v974
        %1440 = vmatprep.subr.mxu0 0.0
        %1441 = vmatpush1.msra.mxu0 0.0
        %1442 = vmatprep.subr.mxu0 0.0
        %1443 = vmatpush1.msra.mxu0 0.0
        %1444 = vmatprep.subr.mxu0 0.0
        %1445 = vmatpush1.msra.mxu0 0.0
        %1446 = vmatprep.subr.mxu0 0.0
        %1447 = vmatpush1.msra.mxu0 0.0
        %1448 = vmatprep.subr.mxu0 0.0
        %1449 = vmatpush1.msra.mxu0 0.0
        %1450 = vmatprep.subr.mxu0 0.0
        %1451 = vmatpush1.msra.mxu0 0.0
        %1452 = vmatprep.subr.mxu0 0.0
        %1453 = vmatpush1.msra.mxu0 0.0
        %1454 = vmatprep.subr.mxu0 0.0
        %1455 = vmatpush1.msra.mxu0 0.0
        %1456 = vmatprep.subr.mxu0 0.0
        %1457 = vmatpush1.msra.mxu0 0.0
        %1458 = vmatprep.subr.mxu0 0.0
        %1459 = vmatpush1.msra.mxu0 0.0
        %1460 = vmatprep.subr.mxu0 0.0
        %1461 = vmatpush1.msra.mxu0 0.0
        %1462 = vmatprep.subr.mxu0 0.0
        %1463 = vmatpush1.msra.mxu0 0.0
        %1464 = vmatprep.subr.mxu0 0.0
        %1465 = vmatpush1.msra.mxu0 0.0
        %1466 = vmatprep.subr.mxu0 0.0
        %1467 = vmatpush1.msra.mxu0 0.0
        %1468 = vmatprep.subr.mxu0 0.0
        %1469 = vmatpush1.msra.mxu0 0.0
        %1470 = vmatprep.subr.mxu0 0.0
        %1471 = vmatpush1.msra.mxu0 0.0
        %1472 = vmatprep.subr.mxu0 0.0
        %1473 = vmatpush1.msra.mxu0 0.0
        %1474 = vmatprep.subr.mxu0 0.0
        %1475 = vmatpush1.msra.mxu0 0.0
        %1476 = vmatprep.subr.mxu0 0.0
        %1477 = vmatpush1.msra.mxu0 0.0
        %1478 = vmatprep.subr.mxu0 0.0
        %1479 = vmatpush1.msra.mxu0 0.0
        %1480 = vmatprep.subr.mxu0 0.0
        %1481 = vmatpush1.msra.mxu0 0.0
        %1482 = vmatprep.subr.mxu0 0.0
        %1483 = vmatpush1.msra.mxu0 0.0
        %1484 = vmatprep.subr.mxu0 0.0
        %1485 = vmatpush1.msra.mxu0 0.0
        %1486 = vmatprep.subr.mxu0 0.0
        %1487 = vmatpush1.msra.mxu0 0.0
        %1488 = vmatprep.subr.mxu0 0.0
        %1489 = vmatpush1.msra.mxu0 0.0
        %1490 = vmatprep.subr.mxu0 0.0
        %1491 = vmatpush1.msra.mxu0 0.0
        %1492 = vmatprep.subr.mxu0 0.0
        %1493 = vmatpush1.msra.mxu0 0.0
        %1494 = vmatprep.subr.mxu0 0.0
        %1495 = vmatpush1.msra.mxu0 0.0
        %1496 = vmatprep.subr.mxu0 0.0
        %1497 = vmatpush1.msra.mxu0 0.0
        %1498 = vmatprep.subr.mxu0 0.0
        %1499 = vmatpush1.msra.mxu0 0.0
        %1500 = vmatprep.subr.mxu0 0.0
        %1501 = vmatpush1.msra.mxu0 0.0
        %1502 = vmatprep.mubr.f32.mxu0 0.0
        %1503 = vmatmul.mubr.f32.gmra.mrb[0].mxu0 %v1436
        %v1504 = vpop.f32.mrb[0].mxu0
        %v1505 = vadd.f32 %v1432, %v1504
        %v1506 = vpop.f32.mrb[0].mxu0
        %1507 = vdwg.mxu0
        %s1508 = scalar_lea.vmem [#allocation10], 64
        %v1509 = vld [vmem:[%s1508] sm:$0xff]
        %v1510 = vld [vmem:[%s1508 + $0x8] sm:$0xff]
        %v1511 = vld [vmem:[%s1508 + $0x10] sm:$0xff]
        %v1512 = vld [vmem:[%s1508 + $0x18] sm:$0xff]
        %1513 = vmatprep.subr.mxu0 0.0
        %1514 = vmatpush1.msra.mxu0 %v1509
        %1515 = vmatprep.subr.mxu0 0.0
        %1516 = vmatpush1.msra.mxu0 %v1510
        %1517 = vmatprep.subr.mxu0 0.0
        %1518 = vmatpush1.msra.mxu0 %v1511
        %1519 = vmatprep.subr.mxu0 0.0
        %1520 = vmatpush1.msra.mxu0 %v1512
        %1521 = vmatprep.subr.mxu0 0.0
        %1522 = vmatpush1.msra.mxu0 0.0
        %1523 = vmatprep.subr.mxu0 0.0
        %1524 = vmatpush1.msra.mxu0 0.0
        %1525 = vmatprep.subr.mxu0 0.0
        %1526 = vmatpush1.msra.mxu0 0.0
        %1527 = vmatprep.subr.mxu0 0.0
        %1528 = vmatpush1.msra.mxu0 0.0
        %1529 = vmatprep.subr.mxu0 0.0
        %1530 = vmatpush1.msra.mxu0 0.0
        %1531 = vmatprep.subr.mxu0 0.0
        %1532 = vmatpush1.msra.mxu0 0.0
        %1533 = vmatprep.subr.mxu0 0.0
        %1534 = vmatpush1.msra.mxu0 0.0
        %1535 = vmatprep.subr.mxu0 0.0
        %1536 = vmatpush1.msra.mxu0 0.0
        %1537 = vmatprep.subr.mxu0 0.0
        %1538 = vmatpush1.msra.mxu0 0.0
        %1539 = vmatprep.subr.mxu0 0.0
        %1540 = vmatpush1.msra.mxu0 0.0
        %1541 = vmatprep.subr.mxu0 0.0
        %1542 = vmatpush1.msra.mxu0 0.0
        %1543 = vmatprep.subr.mxu0 0.0
        %1544 = vmatpush1.msra.mxu0 0.0
        %1545 = vmatprep.subr.mxu0 0.0
        %1546 = vmatpush1.msra.mxu0 0.0
        %1547 = vmatprep.subr.mxu0 0.0
        %1548 = vmatpush1.msra.mxu0 0.0
        %1549 = vmatprep.subr.mxu0 0.0
        %1550 = vmatpush1.msra.mxu0 0.0
        %1551 = vmatprep.subr.mxu0 0.0
        %1552 = vmatpush1.msra.mxu0 0.0
        %1553 = vmatprep.subr.mxu0 0.0
        %1554 = vmatpush1.msra.mxu0 0.0
        %1555 = vmatprep.subr.mxu0 0.0
        %1556 = vmatpush1.msra.mxu0 0.0
        %1557 = vmatprep.subr.mxu0 0.0
        %1558 = vmatpush1.msra.mxu0 0.0
        %1559 = vmatprep.subr.mxu0 0.0
        %1560 = vmatpush1.msra.mxu0 0.0
        %1561 = vmatprep.subr.mxu0 0.0
        %1562 = vmatpush1.msra.mxu0 0.0
        %1563 = vmatprep.subr.mxu0 0.0
        %1564 = vmatpush1.msra.mxu0 0.0
        %1565 = vmatprep.subr.mxu0 0.0
        %1566 = vmatpush1.msra.mxu0 0.0
        %1567 = vmatprep.subr.mxu0 0.0
        %1568 = vmatpush1.msra.mxu0 0.0
        %1569 = vmatprep.subr.mxu0 0.0
        %1570 = vmatpush1.msra.mxu0 0.0
        %1571 = vmatprep.subr.mxu0 0.0
        %1572 = vmatpush1.msra.mxu0 0.0
        %1573 = vmatprep.subr.mxu0 0.0
        %1574 = vmatpush1.msra.mxu0 0.0
        %1575 = vmatprep.subr.mxu0 0.0
        %1576 = vmatpush1.msra.mxu0 0.0
        %1577 = vmatprep.mubr.f32.mxu0 0.0
        %1578 = vmatmul.mubr.f32.gmra.mrb[0].mxu0 %v590
        %v1579 = vpop.f32.mrb[0].mxu0
        %v1580 = vadd.f32 0.0, %v1579
        %v1581 = vpop.f32.mrb[0].mxu0
        %1582 = vdwg.mxu0
        %s1583 = scalar_lea.vmem [#allocation11], 64
        %v1584 = vld [vmem:[%s1583] sm:$0xff]
        %v1585 = vld [vmem:[%s1583 + $0x8] sm:$0xff]
        %v1586 = vld [vmem:[%s1583 + $0x10] sm:$0xff]
        %v1587 = vld [vmem:[%s1583 + $0x18] sm:$0xff]
        %1588 = vmatprep.subr.mxu0 0.0
        %1589 = vmatpush1.msra.mxu0 %v1584
        %1590 = vmatprep.subr.mxu0 0.0
        %1591 = vmatpush1.msra.mxu0 %v1585
        %1592 = vmatprep.subr.mxu0 0.0
        %1593 = vmatpush1.msra.mxu0 %v1586
        %1594 = vmatprep.subr.mxu0 0.0
        %1595 = vmatpush1.msra.mxu0 %v1587
        %1596 = vmatprep.subr.mxu0 0.0
        %1597 = vmatpush1.msra.mxu0 0.0
        %1598 = vmatprep.subr.mxu0 0.0
        %1599 = vmatpush1.msra.mxu0 0.0
        %1600 = vmatprep.subr.mxu0 0.0
        %1601 = vmatpush1.msra.mxu0 0.0
        %1602 = vmatprep.subr.mxu0 0.0
        %1603 = vmatpush1.msra.mxu0 0.0
        %1604 = vmatprep.subr.mxu0 0.0
        %1605 = vmatpush1.msra.mxu0 0.0
        %1606 = vmatprep.subr.mxu0 0.0
        %1607 = vmatpush1.msra.mxu0 0.0
        %1608 = vmatprep.subr.mxu0 0.0
        %1609 = vmatpush1.msra.mxu0 0.0
        %1610 = vmatprep.subr.mxu0 0.0
        %1611 = vmatpush1.msra.mxu0 0.0
        %1612 = vmatprep.subr.mxu0 0.0
        %1613 = vmatpush1.msra.mxu0 0.0
        %1614 = vmatprep.subr.mxu0 0.0
        %1615 = vmatpush1.msra.mxu0 0.0
        %1616 = vmatprep.subr.mxu0 0.0
        %1617 = vmatpush1.msra.mxu0 0.0
        %1618 = vmatprep.subr.mxu0 0.0
        %1619 = vmatpush1.msra.mxu0 0.0
        %1620 = vmatprep.subr.mxu0 0.0
        %1621 = vmatpush1.msra.mxu0 0.0
        %1622 = vmatprep.subr.mxu0 0.0
        %1623 = vmatpush1.msra.mxu0 0.0
        %1624 = vmatprep.subr.mxu0 0.0
        %1625 = vmatpush1.msra.mxu0 0.0
        %1626 = vmatprep.subr.mxu0 0.0
        %1627 = vmatpush1.msra.mxu0 0.0
        %1628 = vmatprep.subr.mxu0 0.0
        %1629 = vmatpush1.msra.mxu0 0.0
        %1630 = vmatprep.subr.mxu0 0.0
        %1631 = vmatpush1.msra.mxu0 0.0
        %1632 = vmatprep.subr.mxu0 0.0
        %1633 = vmatpush1.msra.mxu0 0.0
        %1634 = vmatprep.subr.mxu0 0.0
        %1635 = vmatpush1.msra.mxu0 0.0
        %1636 = vmatprep.subr.mxu0 0.0
        %1637 = vmatpush1.msra.mxu0 0.0
        %1638 = vmatprep.subr.mxu0 0.0
        %1639 = vmatpush1.msra.mxu0 0.0
        %1640 = vmatprep.subr.mxu0 0.0
        %1641 = vmatpush1.msra.mxu0 0.0
        %1642 = vmatprep.subr.mxu0 0.0
        %1643 = vmatpush1.msra.mxu0 0.0
        %1644 = vmatprep.subr.mxu0 0.0
        %1645 = vmatpush1.msra.mxu0 0.0
        %1646 = vmatprep.subr.mxu0 0.0
        %1647 = vmatpush1.msra.mxu0 0.0
        %1648 = vmatprep.subr.mxu0 0.0
        %1649 = vmatpush1.msra.mxu0 0.0
        %1650 = vmatprep.subr.mxu0 0.0
        %1651 = vmatpush1.msra.mxu0 0.0
        %1652 = vmatprep.mubr.f32.mxu0 0.0
        %1653 = vmatmul.mubr.f32.gmra.mrb[0].mxu0 %v667
        %v1654 = vpop.f32.mrb[0].mxu0
        %v1655 = vadd.f32 0.0, %v1654
        %v1656 = vpop.f32.mrb[0].mxu0
        %1657 = vdwg.mxu0
        %s1658 = scalar_lea.vmem [#allocation13], 64
        %v1659 = vld [vmem:[%s1658] sm:$0xff]
        %v1660 = vld [vmem:[%s1658 + $0x8] sm:$0xff]
        %v1661 = vld [vmem:[%s1658 + $0x10] sm:$0xff]
        %v1662 = vld [vmem:[%s1658 + $0x18] sm:$0xff]
        %1663 = vmatprep.subr.mxu0 0.0
        %1664 = vmatpush1.msra.mxu0 %v1659
        %1665 = vmatprep.subr.mxu0 0.0
        %1666 = vmatpush1.msra.mxu0 %v1660
        %1667 = vmatprep.subr.mxu0 0.0
        %1668 = vmatpush1.msra.mxu0 %v1661
        %1669 = vmatprep.subr.mxu0 0.0
        %1670 = vmatpush1.msra.mxu0 %v1662
        %1671 = vmatprep.subr.mxu0 0.0
        %1672 = vmatpush1.msra.mxu0 0.0
        %1673 = vmatprep.subr.mxu0 0.0
        %1674 = vmatpush1.msra.mxu0 0.0
        %1675 = vmatprep.subr.mxu0 0.0
        %1676 = vmatpush1.msra.mxu0 0.0
        %1677 = vmatprep.subr.mxu0 0.0
        %1678 = vmatpush1.msra.mxu0 0.0
        %1679 = vmatprep.subr.mxu0 0.0
        %1680 = vmatpush1.msra.mxu0 0.0
        %1681 = vmatprep.subr.mxu0 0.0
        %1682 = vmatpush1.msra.mxu0 0.0
        %1683 = vmatprep.subr.mxu0 0.0
        %1684 = vmatpush1.msra.mxu0 0.0
        %1685 = vmatprep.subr.mxu0 0.0
        %1686 = vmatpush1.msra.mxu0 0.0
        %1687 = vmatprep.subr.mxu0 0.0
        %1688 = vmatpush1.msra.mxu0 0.0
        %1689 = vmatprep.subr.mxu0 0.0
        %1690 = vmatpush1.msra.mxu0 0.0
        %1691 = vmatprep.subr.mxu0 0.0
        %1692 = vmatpush1.msra.mxu0 0.0
        %1693 = vmatprep.subr.mxu0 0.0
        %1694 = vmatpush1.msra.mxu0 0.0
        %1695 = vmatprep.subr.mxu0 0.0
        %1696 = vmatpush1.msra.mxu0 0.0
        %1697 = vmatprep.subr.mxu0 0.0
        %1698 = vmatpush1.msra.mxu0 0.0
        %1699 = vmatprep.subr.mxu0 0.0
        %1700 = vmatpush1.msra.mxu0 0.0
        %1701 = vmatprep.subr.mxu0 0.0
        %1702 = vmatpush1.msra.mxu0 0.0
        %1703 = vmatprep.subr.mxu0 0.0
        %1704 = vmatpush1.msra.mxu0 0.0
        %1705 = vmatprep.subr.mxu0 0.0
        %1706 = vmatpush1.msra.mxu0 0.0
        %1707 = vmatprep.subr.mxu0 0.0
        %1708 = vmatpush1.msra.mxu0 0.0
        %1709 = vmatprep.subr.mxu0 0.0
        %1710 = vmatpush1.msra.mxu0 0.0
        %1711 = vmatprep.subr.mxu0 0.0
        %1712 = vmatpush1.msra.mxu0 0.0
        %1713 = vmatprep.subr.mxu0 0.0
        %1714 = vmatpush1.msra.mxu0 0.0
        %1715 = vmatprep.subr.mxu0 0.0
        %1716 = vmatpush1.msra.mxu0 0.0
        %1717 = vmatprep.subr.mxu0 0.0
        %1718 = vmatpush1.msra.mxu0 0.0
        %1719 = vmatprep.subr.mxu0 0.0
        %1720 = vmatpush1.msra.mxu0 0.0
        %1721 = vmatprep.subr.mxu0 0.0
        %1722 = vmatpush1.msra.mxu0 0.0
        %1723 = vmatprep.subr.mxu0 0.0
        %1724 = vmatpush1.msra.mxu0 0.0
        %1725 = vmatprep.subr.mxu0 0.0
        %1726 = vmatpush1.msra.mxu0 0.0
        %1727 = vmatprep.mubr.f32.mxu0 0.0
        %1728 = vmatmul.mubr.f32.gmra.mrb[0].mxu0 %v667
        %v1729 = vpop.f32.mrb[0].mxu0
        %v1730 = vadd.f32 0.0, %v1729
        %v1731 = vpop.f32.mrb[0].mxu0
        %1732 = vdwg.mxu0
        %v1734 = vsel %vm813, %v1580, 0
        %v1737 = vsel %vm813, %v1655, 0
        %1739 = vmatprep.subr.mxu0 0.0
        %1740 = vmatpush1.xpose.msra.mxu0 %v1737
        %1741 = vmatprep.subr.mxu0 0.0
        %1742 = vmatpush1.xpose.msra.mxu0 0.0
        %1743 = vmatprep.subr.mxu0 0.0
        %1744 = vmatpush1.xpose.msra.mxu0 0.0
        %1745 = vmatprep.subr.mxu0 0.0
        %1746 = vmatpush1.xpose.msra.mxu0 0.0
        %1747 = vmatprep.subr.mxu0 0.0
        %1748 = vmatpush1.xpose.msra.mxu0 0.0
        %1749 = vmatprep.subr.mxu0 0.0
        %1750 = vmatpush1.xpose.msra.mxu0 0.0
        %1751 = vmatprep.subr.mxu0 0.0
        %1752 = vmatpush1.xpose.msra.mxu0 0.0
        %1753 = vmatprep.subr.mxu0 0.0
        %1754 = vmatpush1.xpose.msra.mxu0 0.0
        %1755 = vmatprep.subr.mxu0 0.0
        %1756 = vmatpush1.xpose.msra.mxu0 0.0
        %1757 = vmatprep.subr.mxu0 0.0
        %1758 = vmatpush1.xpose.msra.mxu0 0.0
        %1759 = vmatprep.subr.mxu0 0.0
        %1760 = vmatpush1.xpose.msra.mxu0 0.0
        %1761 = vmatprep.subr.mxu0 0.0
        %1762 = vmatpush1.xpose.msra.mxu0 0.0
        %1763 = vmatprep.subr.mxu0 0.0
        %1764 = vmatpush1.xpose.msra.mxu0 0.0
        %1765 = vmatprep.subr.mxu0 0.0
        %1766 = vmatpush1.xpose.msra.mxu0 0.0
        %1767 = vmatprep.subr.mxu0 0.0
        %1768 = vmatpush1.xpose.msra.mxu0 0.0
        %1769 = vmatprep.subr.mxu0 0.0
        %1770 = vmatpush1.xpose.msra.mxu0 0.0
        %1771 = vmatprep.subr.mxu0 0.0
        %1772 = vmatpush1.xpose.msra.mxu0 0.0
        %1773 = vmatprep.subr.mxu0 0.0
        %1774 = vmatpush1.xpose.msra.mxu0 0.0
        %1775 = vmatprep.subr.mxu0 0.0
        %1776 = vmatpush1.xpose.msra.mxu0 0.0
        %1777 = vmatprep.subr.mxu0 0.0
        %1778 = vmatpush1.xpose.msra.mxu0 0.0
        %1779 = vmatprep.subr.mxu0 0.0
        %1780 = vmatpush1.xpose.msra.mxu0 0.0
        %1781 = vmatprep.subr.mxu0 0.0
        %1782 = vmatpush1.xpose.msra.mxu0 0.0
        %1783 = vmatprep.subr.mxu0 0.0
        %1784 = vmatpush1.xpose.msra.mxu0 0.0
        %1785 = vmatprep.subr.mxu0 0.0
        %1786 = vmatpush1.xpose.msra.mxu0 0.0
        %1787 = vmatprep.subr.mxu0 0.0
        %1788 = vmatpush1.xpose.msra.mxu0 0.0
        %1789 = vmatprep.subr.mxu0 0.0
        %1790 = vmatpush1.xpose.msra.mxu0 0.0
        %1791 = vmatprep.subr.mxu0 0.0
        %1792 = vmatpush1.xpose.msra.mxu0 0.0
        %1793 = vmatprep.subr.mxu0 0.0
        %1794 = vmatpush1.xpose.msra.mxu0 0.0
        %1795 = vmatprep.subr.mxu0 0.0
        %1796 = vmatpush1.xpose.msra.mxu0 0.0
        %1797 = vmatprep.subr.mxu0 0.0
        %1798 = vmatpush1.xpose.msra.mxu0 0.0
        %1799 = vmatprep.subr.mxu0 0.0
        %1800 = vmatpush1.xpose.msra.mxu0 0.0
        %1801 = vmatprep.subr.mxu0 0.0
        %1802 = vmatpush1.xpose.msra.mxu0 0.0
        %1803 = vmatprep.mubr.f32.mxu0 0.0
        %1804 = vmatmul.mubr.f32.gmra.mrb[0].mxu0 %v1734
        %v1805 = vpop.f32.mrb[0].mxu0
        %v1806 = vadd.f32 0.0, %v1805
        %v1807 = vpop.f32.mrb[0].mxu0
        %1808 = vdwg.mxu0
        %v1809 = vsel %vm813, %v1806, -inf
        %1810 = vmax.xlane.f32.xlu0 %v1809
        %v1811 = vpop.xlane.xlu0 %1810
        %v1812 = vsub.f32 %v1806, %v1811
        %v1813 = vmul.f32 %v1812, 1.442695
        %v1814 = vpow.pop %v1813
        %v1815 = vsel %vm813, %v1814, 0.0
        %1816 = vadd.xlane.f32.xlu0 %v1815
        %v1817 = vpop.xlane.xlu0 %1816
        %v1818 = vrcp.pop %v1817
        %v1819 = vmul.f32 %v1814, %v1818
        %v1821 = vsel %vm813, %v1819, 0
        %1823 = vmatprep.subr.mxu0 0.0
        %1824 = vmatpush1.msra.mxu0 %v1730
        %1825 = vmatprep.subr.mxu0 0.0
        %1826 = vmatpush1.msra.mxu0 0.0
        %1827 = vmatprep.subr.mxu0 0.0
        %1828 = vmatpush1.msra.mxu0 0.0
        %1829 = vmatprep.subr.mxu0 0.0
        %1830 = vmatpush1.msra.mxu0 0.0
        %1831 = vmatprep.subr.mxu0 0.0
        %1832 = vmatpush1.msra.mxu0 0.0
        %1833 = vmatprep.subr.mxu0 0.0
        %1834 = vmatpush1.msra.mxu0 0.0
        %1835 = vmatprep.subr.mxu0 0.0
        %1836 = vmatpush1.msra.mxu0 0.0
        %1837 = vmatprep.subr.mxu0 0.0
        %1838 = vmatpush1.msra.mxu0 0.0
        %1839 = vmatprep.subr.mxu0 0.0
        %1840 = vmatpush1.msra.mxu0 0.0
        %1841 = vmatprep.subr.mxu0 0.0
        %1842 = vmatpush1.msra.mxu0 0.0
        %1843 = vmatprep.subr.mxu0 0.0
        %1844 = vmatpush1.msra.mxu0 0.0
        %1845 = vmatprep.subr.mxu0 0.0
        %1846 = vmatpush1.msra.mxu0 0.0
        %1847 = vmatprep.subr.mxu0 0.0
        %1848 = vmatpush1.msra.mxu0 0.0
        %1849 = vmatprep.subr.mxu0 0.0
        %1850 = vmatpush1.msra.mxu0 0.0
        %1851 = vmatprep.subr.mxu0 0.0
        %1852 = vmatpush1.msra.mxu0 0.0
        %1853 = vmatprep.subr.mxu0 0.0
        %1854 = vmatpush1.msra.mxu0 0.0
        %1855 = vmatprep.subr.mxu0 0.0
        %1856 = vmatpush1.msra.mxu0 0.0
        %1857 = vmatprep.subr.mxu0 0.0
        %1858 = vmatpush1.msra.mxu0 0.0
        %1859 = vmatprep.subr.mxu0 0.0
        %1860 = vmatpush1.msra.mxu0 0.0
        %1861 = vmatprep.subr.mxu0 0.0
        %1862 = vmatpush1.msra.mxu0 0.0
        %1863 = vmatprep.subr.mxu0 0.0
        %1864 = vmatpush1.msra.mxu0 0.0
        %1865 = vmatprep.subr.mxu0 0.0
        %1866 = vmatpush1.msra.mxu0 0.0
        %1867 = vmatprep.subr.mxu0 0.0
        %1868 = vmatpush1.msra.mxu0 0.0
        %1869 = vmatprep.subr.mxu0 0.0
        %1870 = vmatpush1.msra.mxu0 0.0
        %1871 = vmatprep.subr.mxu0 0.0
        %1872 = vmatpush1.msra.mxu0 0.0
        %1873 = vmatprep.subr.mxu0 0.0
        %1874 = vmatpush1.msra.mxu0 0.0
        %1875 = vmatprep.subr.mxu0 0.0
        %1876 = vmatpush1.msra.mxu0 0.0
        %1877 = vmatprep.subr.mxu0 0.0
        %1878 = vmatpush1.msra.mxu0 0.0
        %1879 = vmatprep.subr.mxu0 0.0
        %1880 = vmatpush1.msra.mxu0 0.0
        %1881 = vmatprep.subr.mxu0 0.0
        %1882 = vmatpush1.msra.mxu0 0.0
        %1883 = vmatprep.subr.mxu0 0.0
        %1884 = vmatpush1.msra.mxu0 0.0
        %1885 = vmatprep.subr.mxu0 0.0
        %1886 = vmatpush1.msra.mxu0 0.0
        %1887 = vmatprep.mubr.f32.mxu0 0.0
        %1888 = vmatmul.mubr.f32.gmra.mrb[0].mxu0 %v1821
        %v1889 = vpop.f32.mrb[0].mxu0
        %v1890 = vadd.f32 0.0, %v1889
        %v1891 = vpop.f32.mrb[0].mxu0
        %1892 = vdwg.mxu0
        %s1893 = scalar_lea.vmem [#allocation14], 16
        %v1894 = vld [vmem:[%s1893] sm:$0xff]
        %v1896 = vsel %vm813, %v1890, 0
        %1898 = vmatprep.subr.mxu0 0.0
        %1899 = vmatpush1.msra.mxu0 %v1894
        %1900 = vmatprep.subr.mxu0 0.0
        %1901 = vmatpush1.msra.mxu0 0.0
        %1902 = vmatprep.subr.mxu0 0.0
        %1903 = vmatpush1.msra.mxu0 0.0
        %1904 = vmatprep.subr.mxu0 0.0
        %1905 = vmatpush1.msra.mxu0 0.0
        %1906 = vmatprep.subr.mxu0 0.0
        %1907 = vmatpush1.msra.mxu0 0.0
        %1908 = vmatprep.subr.mxu0 0.0
        %1909 = vmatpush1.msra.mxu0 0.0
        %1910 = vmatprep.subr.mxu0 0.0
        %1911 = vmatpush1.msra.mxu0 0.0
        %1912 = vmatprep.subr.mxu0 0.0
        %1913 = vmatpush1.msra.mxu0 0.0
        %1914 = vmatprep.subr.mxu0 0.0
        %1915 = vmatpush1.msra.mxu0 0.0
        %1916 = vmatprep.subr.mxu0 0.0
        %1917 = vmatpush1.msra.mxu0 0.0
        %1918 = vmatprep.subr.mxu0 0.0
        %1919 = vmatpush1.msra.mxu0 0.0
        %1920 = vmatprep.subr.mxu0 0.0
        %1921 = vmatpush1.msra.mxu0 0.0
        %1922 = vmatprep.subr.mxu0 0.0
        %1923 = vmatpush1.msra.mxu0 0.0
        %1924 = vmatprep.subr.mxu0 0.0
        %1925 = vmatpush1.msra.mxu0 0.0
        %1926 = vmatprep.subr.mxu0 0.0
        %1927 = vmatpush1.msra.mxu0 0.0
        %1928 = vmatprep.subr.mxu0 0.0
        %1929 = vmatpush1.msra.mxu0 0.0
        %1930 = vmatprep.subr.mxu0 0.0
        %1931 = vmatpush1.msra.mxu0 0.0
        %1932 = vmatprep.subr.mxu0 0.0
        %1933 = vmatpush1.msra.mxu0 0.0
        %1934 = vmatprep.subr.mxu0 0.0
        %1935 = vmatpush1.msra.mxu0 0.0
        %1936 = vmatprep.subr.mxu0 0.0
        %1937 = vmatpush1.msra.mxu0 0.0
        %1938 = vmatprep.subr.mxu0 0.0
        %1939 = vmatpush1.msra.mxu0 0.0
        %1940 = vmatprep.subr.mxu0 0.0
        %1941 = vmatpush1.msra.mxu0 0.0
        %1942 = vmatprep.subr.mxu0 0.0
        %1943 = vmatpush1.msra.mxu0 0.0
        %1944 = vmatprep.subr.mxu0 0.0
        %1945 = vmatpush1.msra.mxu0 0.0
        %1946 = vmatprep.subr.mxu0 0.0
        %1947 = vmatpush1.msra.mxu0 0.0
        %1948 = vmatprep.subr.mxu0 0.0
        %1949 = vmatpush1.msra.mxu0 0.0
        %1950 = vmatprep.subr.mxu0 0.0
        %1951 = vmatpush1.msra.mxu0 0.0
        %1952 = vmatprep.subr.mxu0 0.0
        %1953 = vmatpush1.msra.mxu0 0.0
        %1954 = vmatprep.subr.mxu0 0.0
        %1955 = vmatpush1.msra.mxu0 0.0
        %1956 = vmatprep.subr.mxu0 0.0
        %1957 = vmatpush1.msra.mxu0 0.0
        %1958 = vmatprep.subr.mxu0 0.0
        %1959 = vmatpush1.msra.mxu0 0.0
        %1960 = vmatprep.subr.mxu0 0.0
        %1961 = vmatpush1.msra.mxu0 0.0
        %1962 = vmatprep.mubr.f32.mxu0 0.0
        %1963 = vmatmul.mubr.f32.gmra.mrb[0].mxu0 %v1896
        %v1964 = vpop.f32.mrb[0].mxu0
        %v1965 = vadd.f32 0.0, %v1964
        %v1966 = vpop.f32.mrb[0].mxu0
        %1967 = vdwg.mxu0
        %v1968 = vadd.f32 %v1505, %v1965
        %s1969 = scalar_lea.vmem [#allocation10], 96
        %v1970 = vld [vmem:[%s1969] sm:$0xff]
        %v1971 = vld [vmem:[%s1969 + $0x8] sm:$0xff]
        %v1972 = vld [vmem:[%s1969 + $0x10] sm:$0xff]
        %v1973 = vld [vmem:[%s1969 + $0x18] sm:$0xff]
        %1974 = vmatprep.subr.mxu0 0.0
        %1975 = vmatpush1.msra.mxu0 %v1970
        %1976 = vmatprep.subr.mxu0 0.0
        %1977 = vmatpush1.msra.mxu0 %v1971
        %1978 = vmatprep.subr.mxu0 0.0
        %1979 = vmatpush1.msra.mxu0 %v1972
        %1980 = vmatprep.subr.mxu0 0.0
        %1981 = vmatpush1.msra.mxu0 %v1973
        %1982 = vmatprep.subr.mxu0 0.0
        %1983 = vmatpush1.msra.mxu0 0.0
        %1984 = vmatprep.subr.mxu0 0.0
        %1985 = vmatpush1.msra.mxu0 0.0
        %1986 = vmatprep.subr.mxu0 0.0
        %1987 = vmatpush1.msra.mxu0 0.0
        %1988 = vmatprep.subr.mxu0 0.0
        %1989 = vmatpush1.msra.mxu0 0.0
        %1990 = vmatprep.subr.mxu0 0.0
        %1991 = vmatpush1.msra.mxu0 0.0
        %1992 = vmatprep.subr.mxu0 0.0
        %1993 = vmatpush1.msra.mxu0 0.0
        %1994 = vmatprep.subr.mxu0 0.0
        %1995 = vmatpush1.msra.mxu0 0.0
        %1996 = vmatprep.subr.mxu0 0.0
        %1997 = vmatpush1.msra.mxu0 0.0
        %1998 = vmatprep.subr.mxu0 0.0
        %1999 = vmatpush1.msra.mxu0 0.0
        %2000 = vmatprep.subr.mxu0 0.0
        %2001 = vmatpush1.msra.mxu0 0.0
        %2002 = vmatprep.subr.mxu0 0.0
        %2003 = vmatpush1.msra.mxu0 0.0
        %2004 = vmatprep.subr.mxu0 0.0
        %2005 = vmatpush1.msra.mxu0 0.0
        %2006 = vmatprep.subr.mxu0 0.0
        %2007 = vmatpush1.msra.mxu0 0.0
        %2008 = vmatprep.subr.mxu0 0.0
        %2009 = vmatpush1.msra.mxu0 0.0
        %2010 = vmatprep.subr.mxu0 0.0
        %2011 = vmatpush1.msra.mxu0 0.0
        %2012 = vmatprep.subr.mxu0 0.0
        %2013 = vmatpush1.msra.mxu0 0.0
        %2014 = vmatprep.subr.mxu0 0.0
        %2015 = vmatpush1.msra.mxu0 0.0
        %2016 = vmatprep.subr.mxu0 0.0
        %2017 = vmatpush1.msra.mxu0 0.0
        %2018 = vmatprep.subr.mxu0 0.0
        %2019 = vmatpush1.msra.mxu0 0.0
        %2020 = vmatprep.subr.mxu0 0.0
        %2021 = vmatpush1.msra.mxu0 0.0
        %2022 = vmatprep.subr.mxu0 0.0
        %2023 = vmatpush1.msra.mxu0 0.0
        %2024 = vmatprep.subr.mxu0 0.0
        %2025 = vmatpush1.msra.mxu0 0.0
        %2026 = vmatprep.subr.mxu0 0.0
        %2027 = vmatpush1.msra.mxu0 0.0
        %2028 = vmatprep.subr.mxu0 0.0
        %2029 = vmatpush1.msra.mxu0 0.0
        %2030 = vmatprep.subr.mxu0 0.0
        %2031 = vmatpush1.msra.mxu0 0.0
        %2032 = vmatprep.subr.mxu0 0.0
        %2033 = vmatpush1.msra.mxu0 0.0
        %2034 = vmatprep.subr.mxu0 0.0
        %2035 = vmatpush1.msra.mxu0 0.0
        %2036 = vmatprep.subr.mxu0 0.0
        %2037 = vmatpush1.msra.mxu0 0.0
        %2038 = vmatprep.mubr.f32.mxu0 0.0
        %2039 = vmatmul.mubr.f32.gmra.mrb[0].mxu0 %v590
        %v2040 = vpop.f32.mrb[0].mxu0
        %v2041 = vadd.f32 0.0, %v2040
        %v2042 = vpop.f32.mrb[0].mxu0
        %2043 = vdwg.mxu0
        %s2044 = scalar_lea.vmem [#allocation11], 96
        %v2045 = vld [vmem:[%s2044] sm:$0xff]
        %v2046 = vld [vmem:[%s2044 + $0x8] sm:$0xff]
        %v2047 = vld [vmem:[%s2044 + $0x10] sm:$0xff]
        %v2048 = vld [vmem:[%s2044 + $0x18] sm:$0xff]
        %2049 = vmatprep.subr.mxu0 0.0
        %2050 = vmatpush1.msra.mxu0 %v2045
        %2051 = vmatprep.subr.mxu0 0.0
        %2052 = vmatpush1.msra.mxu0 %v2046
        %2053 = vmatprep.subr.mxu0 0.0
        %2054 = vmatpush1.msra.mxu0 %v2047
        %2055 = vmatprep.subr.mxu0 0.0
        %2056 = vmatpush1.msra.mxu0 %v2048
        %2057 = vmatprep.subr.mxu0 0.0
        %2058 = vmatpush1.msra.mxu0 0.0
        %2059 = vmatprep.subr.mxu0 0.0
        %2060 = vmatpush1.msra.mxu0 0.0
        %2061 = vmatprep.subr.mxu0 0.0
        %2062 = vmatpush1.msra.mxu0 0.0
        %2063 = vmatprep.subr.mxu0 0.0
        %2064 = vmatpush1.msra.mxu0 0.0
        %2065 = vmatprep.subr.mxu0 0.0
        %2066 = vmatpush1.msra.mxu0 0.0
        %2067 = vmatprep.subr.mxu0 0.0
        %2068 = vmatpush1.msra.mxu0 0.0
        %2069 = vmatprep.subr.mxu0 0.0
        %2070 = vmatpush1.msra.mxu0 0.0
        %2071 = vmatprep.subr.mxu0 0.0
        %2072 = vmatpush1.msra.mxu0 0.0
        %2073 = vmatprep.subr.mxu0 0.0
        %2074 = vmatpush1.msra.mxu0 0.0
        %2075 = vmatprep.subr.mxu0 0.0
        %2076 = vmatpush1.msra.mxu0 0.0
        %2077 = vmatprep.subr.mxu0 0.0
        %2078 = vmatpush1.msra.mxu0 0.0
        %2079 = vmatprep.subr.mxu0 0.0
        %2080 = vmatpush1.msra.mxu0 0.0
        %2081 = vmatprep.subr.mxu0 0.0
        %2082 = vmatpush1.msra.mxu0 0.0
        %2083 = vmatprep.subr.mxu0 0.0
        %2084 = vmatpush1.msra.mxu0 0.0
        %2085 = vmatprep.subr.mxu0 0.0
        %2086 = vmatpush1.msra.mxu0 0.0
        %2087 = vmatprep.subr.mxu0 0.0
        %2088 = vmatpush1.msra.mxu0 0.0
        %2089 = vmatprep.subr.mxu0 0.0
        %2090 = vmatpush1.msra.mxu0 0.0
        %2091 = vmatprep.subr.mxu0 0.0
        %2092 = vmatpush1.msra.mxu0 0.0
        %2093 = vmatprep.subr.mxu0 0.0
        %2094 = vmatpush1.msra.mxu0 0.0
        %2095 = vmatprep.subr.mxu0 0.0
        %2096 = vmatpush1.msra.mxu0 0.0
        %2097 = vmatprep.subr.mxu0 0.0
        %2098 = vmatpush1.msra.mxu0 0.0
        %2099 = vmatprep.subr.mxu0 0.0
        %2100 = vmatpush1.msra.mxu0 0.0
        %2101 = vmatprep.subr.mxu0 0.0
        %2102 = vmatpush1.msra.mxu0 0.0
        %2103 = vmatprep.subr.mxu0 0.0
        %2104 = vmatpush1.msra.mxu0 0.0
        %2105 = vmatprep.subr.mxu0 0.0
        %2106 = vmatpush1.msra.mxu0 0.0
        %2107 = vmatprep.subr.mxu0 0.0
        %2108 = vmatpush1.msra.mxu0 0.0
        %2109 = vmatprep.subr.mxu0 0.0
        %2110 = vmatpush1.msra.mxu0 0.0
        %2111 = vmatprep.subr.mxu0 0.0
        %2112 = vmatpush1.msra.mxu0 0.0
        %2113 = vmatprep.mubr.f32.mxu0 0.0
        %2114 = vmatmul.mubr.f32.gmra.mrb[0].mxu0 %v667
        %v2115 = vpop.f32.mrb[0].mxu0
        %v2116 = vadd.f32 0.0, %v2115
        %v2117 = vpop.f32.mrb[0].mxu0
        %2118 = vdwg.mxu0
        %s2119 = scalar_lea.vmem [#allocation13], 96
        %v2120 = vld [vmem:[%s2119] sm:$0xff]
        %v2121 = vld [vmem:[%s2119 + $0x8] sm:$0xff]
        %v2122 = vld [vmem:[%s2119 + $0x10] sm:$0xff]
        %v2123 = vld [vmem:[%s2119 + $0x18] sm:$0xff]
        %2124 = vmatprep.subr.mxu0 0.0
        %2125 = vmatpush1.msra.mxu0 %v2120
        %2126 = vmatprep.subr.mxu0 0.0
        %2127 = vmatpush1.msra.mxu0 %v2121
        %2128 = vmatprep.subr.mxu0 0.0
        %2129 = vmatpush1.msra.mxu0 %v2122
        %2130 = vmatprep.subr.mxu0 0.0
        %2131 = vmatpush1.msra.mxu0 %v2123
        %2132 = vmatprep.subr.mxu0 0.0
        %2133 = vmatpush1.msra.mxu0 0.0
        %2134 = vmatprep.subr.mxu0 0.0
        %2135 = vmatpush1.msra.mxu0 0.0
        %2136 = vmatprep.subr.mxu0 0.0
        %2137 = vmatpush1.msra.mxu0 0.0
        %2138 = vmatprep.subr.mxu0 0.0
        %2139 = vmatpush1.msra.mxu0 0.0
        %2140 = vmatprep.subr.mxu0 0.0
        %2141 = vmatpush1.msra.mxu0 0.0
        %2142 = vmatprep.subr.mxu0 0.0
        %2143 = vmatpush1.msra.mxu0 0.0
        %2144 = vmatprep.subr.mxu0 0.0
        %2145 = vmatpush1.msra.mxu0 0.0
        %2146 = vmatprep.subr.mxu0 0.0
        %2147 = vmatpush1.msra.mxu0 0.0
        %2148 = vmatprep.subr.mxu0 0.0
        %2149 = vmatpush1.msra.mxu0 0.0
        %2150 = vmatprep.subr.mxu0 0.0
        %2151 = vmatpush1.msra.mxu0 0.0
        %2152 = vmatprep.subr.mxu0 0.0
        %2153 = vmatpush1.msra.mxu0 0.0
        %2154 = vmatprep.subr.mxu0 0.0
        %2155 = vmatpush1.msra.mxu0 0.0
        %2156 = vmatprep.subr.mxu0 0.0
        %2157 = vmatpush1.msra.mxu0 0.0
        %2158 = vmatprep.subr.mxu0 0.0
        %2159 = vmatpush1.msra.mxu0 0.0
        %2160 = vmatprep.subr.mxu0 0.0
        %2161 = vmatpush1.msra.mxu0 0.0
        %2162 = vmatprep.subr.mxu0 0.0
        %2163 = vmatpush1.msra.mxu0 0.0
        %2164 = vmatprep.subr.mxu0 0.0
        %2165 = vmatpush1.msra.mxu0 0.0
        %2166 = vmatprep.subr.mxu0 0.0
        %2167 = vmatpush1.msra.mxu0 0.0
        %2168 = vmatprep.subr.mxu0 0.0
        %2169 = vmatpush1.msra.mxu0 0.0
        %2170 = vmatprep.subr.mxu0 0.0
        %2171 = vmatpush1.msra.mxu0 0.0
        %2172 = vmatprep.subr.mxu0 0.0
        %2173 = vmatpush1.msra.mxu0 0.0
        %2174 = vmatprep.subr.mxu0 0.0
        %2175 = vmatpush1.msra.mxu0 0.0
        %2176 = vmatprep.subr.mxu0 0.0
        %2177 = vmatpush1.msra.mxu0 0.0
        %2178 = vmatprep.subr.mxu0 0.0
        %2179 = vmatpush1.msra.mxu0 0.0
        %2180 = vmatprep.subr.mxu0 0.0
        %2181 = vmatpush1.msra.mxu0 0.0
        %2182 = vmatprep.subr.mxu0 0.0
        %2183 = vmatpush1.msra.mxu0 0.0
        %2184 = vmatprep.subr.mxu0 0.0
        %2185 = vmatpush1.msra.mxu0 0.0
        %2186 = vmatprep.subr.mxu0 0.0
        %2187 = vmatpush1.msra.mxu0 0.0
        %2188 = vmatprep.mubr.f32.mxu0 0.0
        %2189 = vmatmul.mubr.f32.gmra.mrb[0].mxu0 %v667
        %v2190 = vpop.f32.mrb[0].mxu0
        %v2191 = vadd.f32 0.0, %v2190
        %v2192 = vpop.f32.mrb[0].mxu0
        %2193 = vdwg.mxu0
        %v2195 = vsel %vm813, %v2041, 0
        %v2198 = vsel %vm813, %v2116, 0
        %2200 = vmatprep.subr.mxu0 0.0
        %2201 = vmatpush1.xpose.msra.mxu0 %v2198
        %2202 = vmatprep.subr.mxu0 0.0
        %2203 = vmatpush1.xpose.msra.mxu0 0.0
        %2204 = vmatprep.subr.mxu0 0.0
        %2205 = vmatpush1.xpose.msra.mxu0 0.0
        %2206 = vmatprep.subr.mxu0 0.0
        %2207 = vmatpush1.xpose.msra.mxu0 0.0
        %2208 = vmatprep.subr.mxu0 0.0
        %2209 = vmatpush1.xpose.msra.mxu0 0.0
        %2210 = vmatprep.subr.mxu0 0.0
        %2211 = vmatpush1.xpose.msra.mxu0 0.0
        %2212 = vmatprep.subr.mxu0 0.0
        %2213 = vmatpush1.xpose.msra.mxu0 0.0
        %2214 = vmatprep.subr.mxu0 0.0
        %2215 = vmatpush1.xpose.msra.mxu0 0.0
        %2216 = vmatprep.subr.mxu0 0.0
        %2217 = vmatpush1.xpose.msra.mxu0 0.0
        %2218 = vmatprep.subr.mxu0 0.0
        %2219 = vmatpush1.xpose.msra.mxu0 0.0
        %2220 = vmatprep.subr.mxu0 0.0
        %2221 = vmatpush1.xpose.msra.mxu0 0.0
        %2222 = vmatprep.subr.mxu0 0.0
        %2223 = vmatpush1.xpose.msra.mxu0 0.0
        %2224 = vmatprep.subr.mxu0 0.0
        %2225 = vmatpush1.xpose.msra.mxu0 0.0
        %2226 = vmatprep.subr.mxu0 0.0
        %2227 = vmatpush1.xpose.msra.mxu0 0.0
        %2228 = vmatprep.subr.mxu0 0.0
        %2229 = vmatpush1.xpose.msra.mxu0 0.0
        %2230 = vmatprep.subr.mxu0 0.0
        %2231 = vmatpush1.xpose.msra.mxu0 0.0
        %2232 = vmatprep.subr.mxu0 0.0
        %2233 = vmatpush1.xpose.msra.mxu0 0.0
        %2234 = vmatprep.subr.mxu0 0.0
        %2235 = vmatpush1.xpose.msra.mxu0 0.0
        %2236 = vmatprep.subr.mxu0 0.0
        %2237 = vmatpush1.xpose.msra.mxu0 0.0
        %2238 = vmatprep.subr.mxu0 0.0
        %2239 = vmatpush1.xpose.msra.mxu0 0.0
        %2240 = vmatprep.subr.mxu0 0.0
        %2241 = vmatpush1.xpose.msra.mxu0 0.0
        %2242 = vmatprep.subr.mxu0 0.0
        %2243 = vmatpush1.xpose.msra.mxu0 0.0
        %2244 = vmatprep.subr.mxu0 0.0
        %2245 = vmatpush1.xpose.msra.mxu0 0.0
        %2246 = vmatprep.subr.mxu0 0.0
        %2247 = vmatpush1.xpose.msra.mxu0 0.0
        %2248 = vmatprep.subr.mxu0 0.0
        %2249 = vmatpush1.xpose.msra.mxu0 0.0
        %2250 = vmatprep.subr.mxu0 0.0
        %2251 = vmatpush1.xpose.msra.mxu0 0.0
        %2252 = vmatprep.subr.mxu0 0.0
        %2253 = vmatpush1.xpose.msra.mxu0 0.0
        %2254 = vmatprep.subr.mxu0 0.0
        %2255 = vmatpush1.xpose.msra.mxu0 0.0
        %2256 = vmatprep.subr.mxu0 0.0
        %2257 = vmatpush1.xpose.msra.mxu0 0.0
        %2258 = vmatprep.subr.mxu0 0.0
        %2259 = vmatpush1.xpose.msra.mxu0 0.0
        %2260 = vmatprep.subr.mxu0 0.0
        %2261 = vmatpush1.xpose.msra.mxu0 0.0
        %2262 = vmatprep.subr.mxu0 0.0
        %2263 = vmatpush1.xpose.msra.mxu0 0.0
        %2264 = vmatprep.mubr.f32.mxu0 0.0
        %2265 = vmatmul.mubr.f32.gmra.mrb[0].mxu0 %v2195
        %v2266 = vpop.f32.mrb[0].mxu0
        %v2267 = vadd.f32 0.0, %v2266
        %v2268 = vpop.f32.mrb[0].mxu0
        %2269 = vdwg.mxu0
        %v2270 = vsel %vm813, %v2267, -inf
        %2271 = vmax.xlane.f32.xlu0 %v2270
        %v2272 = vpop.xlane.xlu0 %2271
        %v2273 = vsub.f32 %v2267, %v2272
        %v2274 = vmul.f32 %v2273, 1.442695
        %v2275 = vpow.pop %v2274
        %v2276 = vsel %vm813, %v2275, 0.0
        %2277 = vadd.xlane.f32.xlu0 %v2276
        %v2278 = vpop.xlane.xlu0 %2277
        %v2279 = vrcp.pop %v2278
        %v2280 = vmul.f32 %v2275, %v2279
        %v2282 = vsel %vm813, %v2280, 0
        %2284 = vmatprep.subr.mxu0 0.0
        %2285 = vmatpush1.msra.mxu0 %v2191
        %2286 = vmatprep.subr.mxu0 0.0
        %2287 = vmatpush1.msra.mxu0 0.0
        %2288 = vmatprep.subr.mxu0 0.0
        %2289 = vmatpush1.msra.mxu0 0.0
        %2290 = vmatprep.subr.mxu0 0.0
        %2291 = vmatpush1.msra.mxu0 0.0
        %2292 = vmatprep.subr.mxu0 0.0
        %2293 = vmatpush1.msra.mxu0 0.0
        %2294 = vmatprep.subr.mxu0 0.0
        %2295 = vmatpush1.msra.mxu0 0.0
        %2296 = vmatprep.subr.mxu0 0.0
        %2297 = vmatpush1.msra.mxu0 0.0
        %2298 = vmatprep.subr.mxu0 0.0
        %2299 = vmatpush1.msra.mxu0 0.0
        %2300 = vmatprep.subr.mxu0 0.0
        %2301 = vmatpush1.msra.mxu0 0.0
        %2302 = vmatprep.subr.mxu0 0.0
        %2303 = vmatpush1.msra.mxu0 0.0
        %2304 = vmatprep.subr.mxu0 0.0
        %2305 = vmatpush1.msra.mxu0 0.0
        %2306 = vmatprep.subr.mxu0 0.0
        %2307 = vmatpush1.msra.mxu0 0.0
        %2308 = vmatprep.subr.mxu0 0.0
        %2309 = vmatpush1.msra.mxu0 0.0
        %2310 = vmatprep.subr.mxu0 0.0
        %2311 = vmatpush1.msra.mxu0 0.0
        %2312 = vmatprep.subr.mxu0 0.0
        %2313 = vmatpush1.msra.mxu0 0.0
        %2314 = vmatprep.subr.mxu0 0.0
        %2315 = vmatpush1.msra.mxu0 0.0
        %2316 = vmatprep.subr.mxu0 0.0
        %2317 = vmatpush1.msra.mxu0 0.0
        %2318 = vmatprep.subr.mxu0 0.0
        %2319 = vmatpush1.msra.mxu0 0.0
        %2320 = vmatprep.subr.mxu0 0.0
        %2321 = vmatpush1.msra.mxu0 0.0
        %2322 = vmatprep.subr.mxu0 0.0
        %2323 = vmatpush1.msra.mxu0 0.0
        %2324 = vmatprep.subr.mxu0 0.0
        %2325 = vmatpush1.msra.mxu0 0.0
        %2326 = vmatprep.subr.mxu0 0.0
        %2327 = vmatpush1.msra.mxu0 0.0
        %2328 = vmatprep.subr.mxu0 0.0
        %2329 = vmatpush1.msra.mxu0 0.0
        %2330 = vmatprep.subr.mxu0 0.0
        %2331 = vmatpush1.msra.mxu0 0.0
        %2332 = vmatprep.subr.mxu0 0.0
        %2333 = vmatpush1.msra.mxu0 0.0
        %2334 = vmatprep.subr.mxu0 0.0
        %2335 = vmatpush1.msra.mxu0 0.0
        %2336 = vmatprep.subr.mxu0 0.0
        %2337 = vmatpush1.msra.mxu0 0.0
        %2338 = vmatprep.subr.mxu0 0.0
        %2339 = vmatpush1.msra.mxu0 0.0
        %2340 = vmatprep.subr.mxu0 0.0
        %2341 = vmatpush1.msra.mxu0 0.0
        %2342 = vmatprep.subr.mxu0 0.0
        %2343 = vmatpush1.msra.mxu0 0.0
        %2344 = vmatprep.subr.mxu0 0.0
        %2345 = vmatpush1.msra.mxu0 0.0
        %2346 = vmatprep.subr.mxu0 0.0
        %2347 = vmatpush1.msra.mxu0 0.0
        %2348 = vmatprep.mubr.f32.mxu0 0.0
        %2349 = vmatmul.mubr.f32.gmra.mrb[0].mxu0 %v2282
        %v2350 = vpop.f32.mrb[0].mxu0
        %v2351 = vadd.f32 0.0, %v2350
        %v2352 = vpop.f32.mrb[0].mxu0
        %2353 = vdwg.mxu0
        %s2354 = scalar_lea.vmem [#allocation14], 24
        %v2355 = vld [vmem:[%s2354] sm:$0xff]
        %v2357 = vsel %vm813, %v2351, 0
        %2359 = vmatprep.subr.mxu0 0.0
        %2360 = vmatpush1.msra.mxu0 %v2355
        %2361 = vmatprep.subr.mxu0 0.0
        %2362 = vmatpush1.msra.mxu0 0.0
        %2363 = vmatprep.subr.mxu0 0.0
        %2364 = vmatpush1.msra.mxu0 0.0
        %2365 = vmatprep.subr.mxu0 0.0
        %2366 = vmatpush1.msra.mxu0 0.0
        %2367 = vmatprep.subr.mxu0 0.0
        %2368 = vmatpush1.msra.mxu0 0.0
        %2369 = vmatprep.subr.mxu0 0.0
        %2370 = vmatpush1.msra.mxu0 0.0
        %2371 = vmatprep.subr.mxu0 0.0
        %2372 = vmatpush1.msra.mxu0 0.0
        %2373 = vmatprep.subr.mxu0 0.0
        %2374 = vmatpush1.msra.mxu0 0.0
        %2375 = vmatprep.subr.mxu0 0.0
        %2376 = vmatpush1.msra.mxu0 0.0
        %2377 = vmatprep.subr.mxu0 0.0
        %2378 = vmatpush1.msra.mxu0 0.0
        %2379 = vmatprep.subr.mxu0 0.0
        %2380 = vmatpush1.msra.mxu0 0.0
        %2381 = vmatprep.subr.mxu0 0.0
        %2382 = vmatpush1.msra.mxu0 0.0
        %2383 = vmatprep.subr.mxu0 0.0
        %2384 = vmatpush1.msra.mxu0 0.0
        %2385 = vmatprep.subr.mxu0 0.0
        %2386 = vmatpush1.msra.mxu0 0.0
        %2387 = vmatprep.subr.mxu0 0.0
        %2388 = vmatpush1.msra.mxu0 0.0
        %2389 = vmatprep.subr.mxu0 0.0
        %2390 = vmatpush1.msra.mxu0 0.0
        %2391 = vmatprep.subr.mxu0 0.0
        %2392 = vmatpush1.msra.mxu0 0.0
        %2393 = vmatprep.subr.mxu0 0.0
        %2394 = vmatpush1.msra.mxu0 0.0
        %2395 = vmatprep.subr.mxu0 0.0
        %2396 = vmatpush1.msra.mxu0 0.0
        %2397 = vmatprep.subr.mxu0 0.0
        %2398 = vmatpush1.msra.mxu0 0.0
        %2399 = vmatprep.subr.mxu0 0.0
        %2400 = vmatpush1.msra.mxu0 0.0
        %2401 = vmatprep.subr.mxu0 0.0
        %2402 = vmatpush1.msra.mxu0 0.0
        %2403 = vmatprep.subr.mxu0 0.0
        %2404 = vmatpush1.msra.mxu0 0.0
        %2405 = vmatprep.subr.mxu0 0.0
        %2406 = vmatpush1.msra.mxu0 0.0
        %2407 = vmatprep.subr.mxu0 0.0
        %2408 = vmatpush1.msra.mxu0 0.0
        %2409 = vmatprep.subr.mxu0 0.0
        %2410 = vmatpush1.msra.mxu0 0.0
        %2411 = vmatprep.subr.mxu0 0.0
        %2412 = vmatpush1.msra.mxu0 0.0
        %2413 = vmatprep.subr.mxu0 0.0
        %2414 = vmatpush1.msra.mxu0 0.0
        %2415 = vmatprep.subr.mxu0 0.0
        %2416 = vmatpush1.msra.mxu0 0.0
        %2417 = vmatprep.subr.mxu0 0.0
        %2418 = vmatpush1.msra.mxu0 0.0
        %2419 = vmatprep.subr.mxu0 0.0
        %2420 = vmatpush1.msra.mxu0 0.0
        %2421 = vmatprep.subr.mxu0 0.0
        %2422 = vmatpush1.msra.mxu0 0.0
        %2423 = vmatprep.mubr.f32.mxu0 0.0
        %2424 = vmatmul.mubr.f32.gmra.mrb[0].mxu0 %v2357
        %v2425 = vpop.f32.mrb[0].mxu0
        %v2426 = vadd.f32 0.0, %v2425
        %v2427 = vpop.f32.mrb[0].mxu0
        %2428 = vdwg.mxu0
        %v2429 = vadd.f32 %v1968, %v2426
        %v2430 = vld [vmem:[#allocation16] sm:$0x1]
        %v2432 = vlaneseq
        %v2433 = vshrl.u32 %v2432, 7
        %v2434 = vsub.s32 0, %v2433
        %v2435 = vrot.slane %v2430, %v2434
        %v2437 = vadd.f32 %v2429, %v2435
        %v2438 = vld [vmem:[#allocation17] sm:$0x1]
        %v2440 = vlaneseq
        %v2441 = vshrl.u32 %v2440, 7
        %v2442 = vsub.s32 0, %v2441
        %v2443 = vrot.slane %v2438, %v2442
        %v2445 = vmul.f32 %v2437, %v2443
        %v2446 = vadd.f32 %v537, %v2445
        %2447 = vst.msk [vmem:[%s536] sm:$0xff] %vm541, %v2446
        %s2448 = sand.u32 %s278, 1
        %s2449 = scalar_lea.sflag [#allocation4], %s2448
        %s2450 = sand.u32 %s278, 1
        %s2451 = smul.addr %s2450, 8
        %s2452 = scalar_lea.vmem [#allocation19], %s2451
        // Predicated region
        $region101: #{tpu_custom_call.1} parent=59 // pred_check
          %p2453 = pneg %p288
        $region102: #{tpu_custom_call.1} parent=59 // pred_check_branch
          %2455 = sbr.rel (%p2453) target = $region104
        $region103: #{tpu_custom_call.1} parent=59 // pred_region
          %s2457 = ssub.s32 128, 128
          %2458 = vsyncadd %s2449, %s2457
          %s2459 = sadd.s32 %s39, %s38
          %s2460 = smul.addr %s2459, 128
          %s2461 = scalar_lea.hbm %s10, %s2460
          %s2463 = sshll.u32 %s2452, 4
          %s2464 = int_to_ptr.vmem [resolvable:$true] %s2463
          %2466 = dma.vmem_to_hbm [thread:$0]  %s2464, 128, %s2461, %s2449
        $region104: #{tpu_custom_call.1} parent=59 // pred_fallthru
          _
      $region60: #{tpu_custom_call.1} parent=5 // pred_fallthru
        _
      %p2467 = scmp.le.s32.totalorder 2, %s29
      // Predicated region
      $region105: #{tpu_custom_call.1} parent=5 // pred_check
        %p2468 = pneg %p2467
      $region106: #{tpu_custom_call.1} parent=5 // pred_check_branch
        %2470 = sbr.rel (%p2468) target = $region108
      $region107: #{tpu_custom_call.1} parent=5 // pred_region
        %s2471 = ssub.s32 %s29, 2
        // Predicated region
        $region109: #{tpu_custom_call.1} parent=107 // pred_check
          %p2472 = pneg %p294
        $region110: #{tpu_custom_call.1} parent=107 // pred_check_branch
          %2474 = sbr.rel (%p2472) target = $region112
        $region111: #{tpu_custom_call.1} parent=107 // pred_region
          %s2475 = sand.u32 %s279, 1
          %s2476 = scalar_lea.sflag [#allocation4], %s2475
          %s2477 = sand.u32 %s279, 1
          %s2478 = smul.addr %s2477, 8
          %s2479 = scalar_lea.vmem [#allocation19], %s2478
          %2480 = dma.done %s2476, 128
        $region112: #{tpu_custom_call.1} parent=107 // pred_fallthru
          _
      $region108: #{tpu_custom_call.1} parent=5 // pred_fallthru
        _
    $region6: #{tpu_custom_call.1} parent=1 // loop_footer
      %s33 = sadd.s32 1, %s29
    $region7: #{tpu_custom_call.1} parent=1 // loop_footer_branch
      %28 = sbr.rel target = $region3
    $region8: #{tpu_custom_call.1} parent=1 // loop_exit
      _
    %2481 = vsyncpa [#allocation3], 1
    %s2482 = scalar_lea.sflag [#allocation3], 1
    %2483 = vsyncpa %s2482, 1
    %2484 = vsyncpa [#allocation6], 1
    %s2485 = scalar_lea.sflag [#allocation6], 1
    %2486 = vsyncpa %s2485, 1
    %2487 = vsyncpa [#allocation9], 1
    %2488 = vsyncpa [#allocation12], 1
    %2489 = vsyncpa [#allocation15], 1
    %2490 = vsyncpa [#allocation18], 1
    %2491 = vsyncpa [#allocation4], 1
    %s2492 = scalar_lea.sflag [#allocation4], 1
    %2493 = vsyncpa %s2492, 1

</llo_original>
